<compile_context>
chip_gen: v6e
topology: v6e:2x2x1
jax: 0.10.0
libtpu: 0.0.40
codegen_flags: <defaults>
</compile_context>

<pallas_src>
import functools

import jax
import jax.numpy as jnp
from jax.experimental import pallas as pl
from jax.experimental.pallas import tpu as pltpu

PAD = 128          # lane-dense feature / node padding
EDGE_SUBLANE = 16  # bf16 sublane packing for the edge axis


# ----------------------------------------------------------------------------
# Fused Pallas kernel: all GINE layers + fc head + segment softmax
# ----------------------------------------------------------------------------
def fused_actor_kernel(x_ref, ea_ref, gmat_ref, smat_ref, sg_ref,
                       wecat_ref, becat_ref, w1_ref, w2_ref, bias_ref,
                       wfc_ref, out_ref, *, n_layers, n_real, pad):
    f32, bf16 = jnp.float32, jnp.bfloat16
    h = x_ref[...]                                        # (Np, P) f32

    # All layers' edge projections in ONE 256-wide matmul (off the serial chain).
    e_proj_all = jnp.dot(ea_ref[...].astype(bf16), wecat_ref[...],
                         preferred_element_type=f32) + becat_ref[0:1, :]

    gmat = gmat_ref[...]                                  # (Ep, Np) bf16 0/1
    smat = smat_ref[...]                                  # (Ep, Np) bf16 0/1

    for i in range(n_layers):                             # static unroll
        b = bias_ref[i]                                   # (8, P): row0=b1', row1=b2
        # gather x[src] via one-hot matmul (bf16 operands -> single-pass MXU)
        x_src = jnp.dot(gmat, h.astype(bf16), preferred_element_type=f32)
        msg = jnp.maximum(x_src + e_proj_all[:, i * pad:(i + 1) * pad], 0.0)
        # scatter-add to dst nodes: contract the edge axis of one_hot(dst)
        aggr = jax.lax.dot_general(smat, msg.astype(bf16),
                                   (((0,), (0,)), ((), ())),
                                   preferred_element_type=f32)        # (Np, P)
        z = h + aggr                                      # (1+eps)*x + aggr, eps=0
        # MLP: Linear(BN folded) -> ReLU -> Linear, then outer ReLU (f32 VPU)
        h1 = jnp.dot(z.astype(bf16), w1_ref[i],
                     preferred_element_type=f32) + b[0:1, :]
        h2 = jnp.dot(jnp.maximum(h1, 0.0).astype(bf16), w2_ref[i],
                     preferred_element_type=f32) + b[1:2, :]
        h = jnp.maximum(h2, 0.0)

    # head: fc1 -> ReLU -> fc2 -> ReLU (bias=False)
    f1 = jnp.maximum(jnp.dot(h.astype(bf16), wfc_ref[0],
                             preferred_element_type=f32), 0.0)
    f2 = jnp.maximum(jnp.dot(f1.astype(bf16), wfc_ref[1],
                             preferred_element_type=f32), 0.0)

    # per-graph (segment) softmax.  Per-column max over REAL rows is a valid
    # shift (constant per column => cancels exactly per graph); padded rows are
    # excluded.  den is one same-graph-mask matmul, kept f32 so per-graph
    # normalization is exact up to the approx reciprocal.
    shift = jnp.max(f2[:n_real], axis=0, keepdims=True)   # (1, P)
    ex = jnp.exp(f2 - shift)                              # (Np, P) f32
    den = jnp.dot(sg_ref[...], ex, preferred_element_type=f32)        # (Np, P)
    den = jnp.maximum(den, 1e-30)   # underflow / padded-row guard (no NaN/Inf)
    out_ref[...] = ex * pl.reciprocal(den, approx=True)


# ----------------------------------------------------------------------------
# Host-side helpers: padding, BN folding, parameter packing
# ----------------------------------------------------------------------------
def _pad2(a, rows, cols, dtype=jnp.float32):
    out = jnp.zeros((rows, cols), dtype)
    return out.at[:a.shape[0], :a.shape[1]].set(a.astype(dtype))


def _pad_rows(a, rows):
    out = jnp.zeros((rows,) + a.shape[1:], a.dtype)
    return out.at[:a.shape[0]].set(a)


def pack_params(params, pad=PAD, bn_eps=1e-5):
    """Fold BN into the first MLP linear, pad to `pad` lanes, stack, bf16 weights."""
    we_cols, w1_l, w2_l, b_l = [], [], [], []
    n_layers = len(params["gin"])
    becat = jnp.zeros((8, n_layers * pad), jnp.float32)
    for i, p in enumerate(params["gin"]):
        scale = p["gamma"] * jax.lax.rsqrt(p["var"] + bn_eps)         # (1, cout)
        w1f = p["w1"] * scale                                         # (cin, cout)
        b1f = (p["b1"] - p["mean"]) * scale + p["beta"]               # (1, cout)
        we_cols.append(_pad2(p["we"], pad, pad, jnp.bfloat16))
        becat = becat.at[0, i * pad:i * pad + p["be"].shape[1]].set(p["be"][0])
        w1_l.append(_pad2(w1f, pad, pad, jnp.bfloat16))
        w2_l.append(_pad2(p["w2"], pad, pad, jnp.bfloat16))
        bias = jnp.zeros((8, pad), jnp.float32)                       # 8 sublanes
        bias = bias.at[0, :b1f.shape[1]].set(b1f[0])
        bias = bias.at[1, :p["b2"].shape[1]].set(p["b2"][0])
        b_l.append(bias)
    return {
        "WE_CAT": jnp.concatenate(we_cols, axis=1),                   # (P, L*P) bf16
        "BE_CAT": becat,                                              # (8, L*P) f32
        "W1": jnp.stack(w1_l),                                        # (L, P, P) bf16
        "W2": jnp.stack(w2_l),                                        # (L, P, P) bf16
        "B": jnp.stack(b_l),                                          # (L, 8, P) f32
        "WFC": jnp.stack([_pad2(params["fc1"], pad, pad, jnp.bfloat16),
                          _pad2(params["fc2"], pad, pad, jnp.bfloat16)]),  # (2,P,P)
    }


# ----------------------------------------------------------------------------
# Forward wrapper (single fused pallas_call)
# ----------------------------------------------------------------------------
def position_actor_forward(packed, x, edge_index, batch, edge_attr,
                           num_graphs, out_size, n_layers):
    n_real = x.shape[0]
    e_real = edge_attr.shape[0]
    n_pad = ((n_real + PAD - 1) // PAD) * PAD             # lane-dense node axis
    e_pad = ((e_real + EDGE_SUBLANE - 1) // EDGE_SUBLANE) * EDGE_SUBLANE

    src, dst = edge_index[0], edge_index[1]
    # one-hot gather/scatter matrices: 0/1 exact in bf16, lane dim = n_pad = 128.
    gmat = _pad_rows(jax.nn.one_hot(src, n_pad, dtype=jnp.bfloat16), e_pad)  # (Ep, Np)
    smat = _pad_rows(jax.nn.one_hot(dst, n_pad, dtype=jnp.bfloat16), e_pad)  # (Ep, Np)
    # same-graph mask (Np, Np), f32 so the softmax denominator is exact.
    onehot = jax.nn.one_hot(batch, num_graphs, dtype=jnp.float32)            # (N, G)
    sg = jnp.zeros((n_pad, n_pad), jnp.float32).at[:n_real, :n_real].set(
        onehot @ onehot.T)

    xp = _pad2(x, n_pad, PAD, jnp.float32)
    eap = _pad2(edge_attr, e_pad, PAD, jnp.float32)

    kernel = functools.partial(fused_actor_kernel, n_layers=n_layers,
                               n_real=n_real, pad=PAD)
    vmem = pl.BlockSpec(memory_space=pltpu.MemorySpace.VMEM)
    out_padded = pl.pallas_call(
        kernel,
        out_shape=jax.ShapeDtypeStruct((n_pad, PAD), jnp.float32),
        in_specs=[vmem] * 11,
        out_specs=vmem,
    )(xp, eap, gmat, smat, sg,
      packed["WE_CAT"], packed["BE_CAT"], packed["W1"], packed["W2"],
      packed["B"], packed["WFC"])
    return out_padded[:n_real, :out_size]


# ----------------------------------------------------------------------------
# Deterministic parameter init (matches the PyTorch module's structure)
# ----------------------------------------------------------------------------
def init_params(key, in_size, out_size, hide_size_list, hide_size_fc,
                n_layers, edge_dim):
    size_list = [in_size] + list(hide_size_list)
    params = {"gin": []}
    for i in range(n_layers):
        cin, cout = size_list[i], size_list[i + 1]
        key, k1, k2, k3 = jax.random.split(key, 4)
        params["gin"].append({
            "we": 0.1 * jax.random.normal(k1, (edge_dim, cin), jnp.float32),
            "be": jnp.zeros((1, cin), jnp.float32),
            "w1": 0.1 * jax.random.normal(k2, (cin, cout), jnp.float32),
            "b1": jnp.zeros((1, cout), jnp.float32),
            # BatchNorm1d eval-mode running stats (deterministic)
            "gamma": jnp.ones((1, cout), jnp.float32),
            "beta": jnp.zeros((1, cout), jnp.float32),
            "mean": jnp.zeros((1, cout), jnp.float32),
            "var": jnp.ones((1, cout), jnp.float32),
            "w2": 0.1 * jax.random.normal(k3, (cout, cout), jnp.float32),
            "b2": jnp.zeros((1, cout), jnp.float32),
        })
    key, k1, k2 = jax.random.split(key, 3)
    params["fc1"] = 0.1 * jax.random.normal(
        k1, (size_list[-1], hide_size_fc), jnp.float32)               # bias=False
    params["fc2"] = 0.1 * jax.random.normal(
        k2, (hide_size_fc, out_size), jnp.float32)                    # bias=False
    return params


# ----------------------------------------------------------------------------
# Pure-JAX f32 reference (for correctness checking)
# ----------------------------------------------------------------------------
def reference_forward(params, x, edge_index, batch, edge_attr, num_graphs):
    src, dst = edge_index[0], edge_index[1]
    h = x
    for p in params["gin"]:
        e_proj = edge_attr @ p["we"] + p["be"]
        msg = jax.nn.relu(h[src] + e_proj)
        aggr = jax.ops.segment_sum(msg, dst, num_segments=x.shape[0])
        z = h + aggr
        h1 = z @ p["w1"] + p["b1"]
        bn = (h1 - p["mean"]) * jax.lax.rsqrt(p["var"] + 1e-5) * p["gamma"] + p["beta"]
        h = jax.nn.relu(jax.nn.relu(bn) @ p["w2"] + p["b2"])
    f1 = jax.nn.relu(h @ params["fc1"])
    f2 = jax.nn.relu(f1 @ params["fc2"])
    mx = jax.ops.segment_max(f2, batch, num_segments=num_graphs)
    ex = jnp.exp(f2 - mx[batch])
    den = jax.ops.segment_sum(ex, batch, num_segments=num_graphs)
    return ex / den[batch]


# ----------------------------------------------------------------------------
if __name__ == "__main__":
    # module hyper-parameters
    in_size = 8
    out_size = 4
    hide_size_list = [16, 16]
    hide_size_fc = 32
    n_layers = 2
    edge_dim = 4

    # graph data: 16 nodes in 2 graphs, 32 directed edges
    N, E, NUM_GRAPHS = 16, 32, 2

    key = jax.random.PRNGKey(0)
    key, kx, ke, ks, kd = jax.random.split(key, 5)
    x = jax.random.normal(kx, (N, in_size), jnp.float32)
    edge_attr = jax.random.normal(ke, (E, edge_dim), jnp.float32)
    # keep edges within each graph's node range (graph 0: 0..7, graph 1: 8..15)
    src = jax.random.randint(ks, (E,), 0, 8)
    dst = jax.random.randint(kd, (E,), 0, 8)
    half = E // 2
    offset = jnp.concatenate([jnp.zeros((half,), jnp.int32),
                              jnp.full((half,), 8, jnp.int32)])
    edge_index = jnp.stack([src + offset, dst + offset], axis=0)       # (2, E)
    batch = jnp.concatenate([jnp.zeros((8,), jnp.int32),
                             jnp.ones((8,), jnp.int32)])               # (N,)

    params = init_params(key, in_size, out_size, hide_size_list,
                         hide_size_fc, n_layers, edge_dim)
    packed = pack_params(params)

    fwd = jax.jit(functools.partial(position_actor_forward,
                                    num_graphs=NUM_GRAPHS,
                                    out_size=out_size,
                                    n_layers=n_layers))
    action_prob = fwd(packed, x, edge_index, batch, edge_attr)
    jax.block_until_ready(action_prob)

    assert action_prob.shape == (N, out_size)
    assert bool(jnp.all(jnp.isfinite(action_prob)))
    assert bool(jnp.all(action_prob >= 0.0))
    # per-graph, per-feature probabilities must sum to 1
    # (tolerance accounts for the EUP approximate reciprocal)
    seg_sums = jax.ops.segment_sum(action_prob, batch, num_segments=NUM_GRAPHS)
    assert bool(jnp.allclose(seg_sums, 1.0, atol=5e-3))
    # match the pure-JAX f32 reference (tolerance absorbs bf16 MXU operands)
    ref = reference_forward(params, x, edge_index, batch, edge_attr, NUM_GRAPHS)
    assert bool(jnp.allclose(action_prob, ref, atol=5e-3, rtol=5e-3))
    print("KERNEL_OK")
</pallas_src>

<mosaic_0001>
module attributes {stable_mosaic.version = 11 : i64} {
  func.func @fused_actor_kernel(%arg0: memref<128x128xf32, #tpu.memory_space<vmem>>, %arg1: memref<32x128xf32, #tpu.memory_space<vmem>>, %arg2: memref<32x128xbf16, #tpu.memory_space<vmem>>, %arg3: memref<32x128xbf16, #tpu.memory_space<vmem>>, %arg4: memref<128x128xf32, #tpu.memory_space<vmem>>, %arg5: memref<128x256xbf16, #tpu.memory_space<vmem>>, %arg6: memref<8x256xf32, #tpu.memory_space<vmem>>, %arg7: memref<2x128x128xbf16, #tpu.memory_space<vmem>>, %arg8: memref<2x128x128xbf16, #tpu.memory_space<vmem>>, %arg9: memref<2x8x128xf32, #tpu.memory_space<vmem>>, %arg10: memref<2x128x128xbf16, #tpu.memory_space<vmem>>, %arg11: memref<128x128xf32, #tpu.memory_space<vmem>>) attributes {dimension_semantics = [], scalar_prefetch = 0 : i64, scratch_operands = 0 : i64, tpu.core_type = #tpu.core_type<tc>} {
    %c0 = arith.constant 0 : index
    %c0_0 = arith.constant 0 : index
    %0 = vector.load %arg0[%c0, %c0_0] : memref<128x128xf32, #tpu.memory_space<vmem>>, vector<128x128xf32>
    %c0_1 = arith.constant 0 : index
    %c0_2 = arith.constant 0 : index
    %1 = vector.load %arg1[%c0_1, %c0_2] : memref<32x128xf32, #tpu.memory_space<vmem>>, vector<32x128xf32>
    %2 = arith.truncf %1 : vector<32x128xf32> to vector<32x128xbf16>
    %c0_3 = arith.constant 0 : index
    %c0_4 = arith.constant 0 : index
    %3 = vector.load %arg5[%c0_3, %c0_4] : memref<128x256xbf16, #tpu.memory_space<vmem>>, vector<128x256xbf16>
    %cst = arith.constant dense<0.000000e+00> : vector<32x256xf32>
    %4 = tpu.matmul %2, %3, %cst {dimension_numbers = #tpu.dot_dimension_numbers<[1], [0], [0], [1], [0, 0, 1, 1], [], []>} : vector<32x128xbf16>, vector<128x256xbf16>, vector<32x256xf32> -> vector<32x256xf32>
    %c0_5 = arith.constant 0 : index
    %c0_6 = arith.constant 0 : index
    %5 = vector.load %arg6[%c0_5, %c0_6] : memref<8x256xf32, #tpu.memory_space<vmem>>, vector<1x256xf32>
    %6 = vector.broadcast %5 : vector<1x256xf32> to vector<32x256xf32>
    %7 = arith.addf %4, %6 : vector<32x256xf32>
    %c0_7 = arith.constant 0 : index
    %c0_8 = arith.constant 0 : index
    %8 = vector.load %arg2[%c0_7, %c0_8] : memref<32x128xbf16, #tpu.memory_space<vmem>>, vector<32x128xbf16>
    %c0_9 = arith.constant 0 : index
    %c0_10 = arith.constant 0 : index
    %9 = vector.load %arg3[%c0_9, %c0_10] : memref<32x128xbf16, #tpu.memory_space<vmem>>, vector<32x128xbf16>
    %c0_11 = arith.constant 0 : index
    %c0_12 = arith.constant 0 : index
    %c0_13 = arith.constant 0 : index
    %10 = vector.load %arg9[%c0_11, %c0_12, %c0_13] : memref<2x8x128xf32, #tpu.memory_space<vmem>>, vector<1x8x128xf32>
    %11 = vector.shape_cast %10 : vector<1x8x128xf32> to vector<8x128xf32>
    %12 = arith.truncf %0 : vector<128x128xf32> to vector<128x128xbf16>
    %cst_14 = arith.constant dense<0.000000e+00> : vector<32x128xf32>
    %13 = tpu.matmul %8, %12, %cst_14 {dimension_numbers = #tpu.dot_dimension_numbers<[1], [0], [0], [1], [0, 0, 1, 1], [], []>} : vector<32x128xbf16>, vector<128x128xbf16>, vector<32x128xf32> -> vector<32x128xf32>
    %14 = vector.extract_strided_slice %7 {offsets = [0, 0], sizes = [32, 128], strides = [1, 1]} : vector<32x256xf32> to vector<32x128xf32>
    %15 = arith.addf %13, %14 : vector<32x128xf32>
    %cst_15 = arith.constant 0.000000e+00 : f32
    %16 = vector.broadcast %cst_15 : f32 to vector<32x128xf32>
    %17 = arith.maximumf %15, %16 : vector<32x128xf32>
    %18 = arith.truncf %17 : vector<32x128xf32> to vector<32x128xbf16>
    %cst_16 = arith.constant dense<0.000000e+00> : vector<128x128xf32>
    %19 = tpu.matmul %9, %18, %cst_16 {dimension_numbers = #tpu.dot_dimension_numbers<[0], [0], [1], [1], [0, 1, 1, 1], [], []>} : vector<32x128xbf16>, vector<32x128xbf16>, vector<128x128xf32> -> vector<128x128xf32>
    %20 = arith.addf %0, %19 : vector<128x128xf32>
    %21 = arith.truncf %20 : vector<128x128xf32> to vector<128x128xbf16>
    %c0_17 = arith.constant 0 : index
    %c0_18 = arith.constant 0 : index
    %c0_19 = arith.constant 0 : index
    %22 = vector.load %arg7[%c0_17, %c0_18, %c0_19] : memref<2x128x128xbf16, #tpu.memory_space<vmem>>, vector<1x128x128xbf16>
    %23 = vector.shape_cast %22 : vector<1x128x128xbf16> to vector<128x128xbf16>
    %cst_20 = arith.constant dense<0.000000e+00> : vector<128x128xf32>
    %24 = tpu.matmul %21, %23, %cst_20 {dimension_numbers = #tpu.dot_dimension_numbers<[1], [0], [0], [1], [0, 0, 1, 1], [], []>} : vector<128x128xbf16>, vector<128x128xbf16>, vector<128x128xf32> -> vector<128x128xf32>
    %25 = vector.extract_strided_slice %11 {offsets = [0, 0], sizes = [1, 128], strides = [1, 1]} : vector<8x128xf32> to vector<1x128xf32>
    %26 = vector.broadcast %25 : vector<1x128xf32> to vector<128x128xf32>
    %27 = arith.addf %24, %26 : vector<128x128xf32>
    %cst_21 = arith.constant 0.000000e+00 : f32
    %28 = vector.broadcast %cst_21 : f32 to vector<128x128xf32>
    %29 = arith.maximumf %27, %28 : vector<128x128xf32>
    %30 = arith.truncf %29 : vector<128x128xf32> to vector<128x128xbf16>
    %c0_22 = arith.constant 0 : index
    %c0_23 = arith.constant 0 : index
    %c0_24 = arith.constant 0 : index
    %31 = vector.load %arg8[%c0_22, %c0_23, %c0_24] : memref<2x128x128xbf16, #tpu.memory_space<vmem>>, vector<1x128x128xbf16>
    %32 = vector.shape_cast %31 : vector<1x128x128xbf16> to vector<128x128xbf16>
    %cst_25 = arith.constant dense<0.000000e+00> : vector<128x128xf32>
    %33 = tpu.matmul %30, %32, %cst_25 {dimension_numbers = #tpu.dot_dimension_numbers<[1], [0], [0], [1], [0, 0, 1, 1], [], []>} : vector<128x128xbf16>, vector<128x128xbf16>, vector<128x128xf32> -> vector<128x128xf32>
    %34 = vector.extract_strided_slice %11 {offsets = [1, 0], sizes = [1, 128], strides = [1, 1]} : vector<8x128xf32> to vector<1x128xf32>
    %35 = vector.broadcast %34 : vector<1x128xf32> to vector<128x128xf32>
    %36 = arith.addf %33, %35 : vector<128x128xf32>
    %cst_26 = arith.constant 0.000000e+00 : f32
    %37 = vector.broadcast %cst_26 : f32 to vector<128x128xf32>
    %38 = arith.maximumf %36, %37 : vector<128x128xf32>
    %c1 = arith.constant 1 : index
    %c0_27 = arith.constant 0 : index
    %c0_28 = arith.constant 0 : index
    %39 = vector.load %arg9[%c1, %c0_27, %c0_28] : memref<2x8x128xf32, #tpu.memory_space<vmem>>, vector<1x8x128xf32>
    %40 = vector.shape_cast %39 : vector<1x8x128xf32> to vector<8x128xf32>
    %41 = arith.truncf %38 : vector<128x128xf32> to vector<128x128xbf16>
    %cst_29 = arith.constant dense<0.000000e+00> : vector<32x128xf32>
    %42 = tpu.matmul %8, %41, %cst_29 {dimension_numbers = #tpu.dot_dimension_numbers<[1], [0], [0], [1], [0, 0, 1, 1], [], []>} : vector<32x128xbf16>, vector<128x128xbf16>, vector<32x128xf32> -> vector<32x128xf32>
    %43 = vector.extract_strided_slice %7 {offsets = [0, 128], sizes = [32, 128], strides = [1, 1]} : vector<32x256xf32> to vector<32x128xf32>
    %44 = arith.addf %42, %43 : vector<32x128xf32>
    %cst_30 = arith.constant 0.000000e+00 : f32
    %45 = vector.broadcast %cst_30 : f32 to vector<32x128xf32>
    %46 = arith.maximumf %44, %45 : vector<32x128xf32>
    %47 = arith.truncf %46 : vector<32x128xf32> to vector<32x128xbf16>
    %cst_31 = arith.constant dense<0.000000e+00> : vector<128x128xf32>
    %48 = tpu.matmul %9, %47, %cst_31 {dimension_numbers = #tpu.dot_dimension_numbers<[0], [0], [1], [1], [0, 1, 1, 1], [], []>} : vector<32x128xbf16>, vector<32x128xbf16>, vector<128x128xf32> -> vector<128x128xf32>
    %49 = arith.addf %38, %48 : vector<128x128xf32>
    %50 = arith.truncf %49 : vector<128x128xf32> to vector<128x128xbf16>
    %c1_32 = arith.constant 1 : index
    %c0_33 = arith.constant 0 : index
    %c0_34 = arith.constant 0 : index
    %51 = vector.load %arg7[%c1_32, %c0_33, %c0_34] : memref<2x128x128xbf16, #tpu.memory_space<vmem>>, vector<1x128x128xbf16>
    %52 = vector.shape_cast %51 : vector<1x128x128xbf16> to vector<128x128xbf16>
    %cst_35 = arith.constant dense<0.000000e+00> : vector<128x128xf32>
    %53 = tpu.matmul %50, %52, %cst_35 {dimension_numbers = #tpu.dot_dimension_numbers<[1], [0], [0], [1], [0, 0, 1, 1], [], []>} : vector<128x128xbf16>, vector<128x128xbf16>, vector<128x128xf32> -> vector<128x128xf32>
    %54 = vector.extract_strided_slice %40 {offsets = [0, 0], sizes = [1, 128], strides = [1, 1]} : vector<8x128xf32> to vector<1x128xf32>
    %55 = vector.broadcast %54 : vector<1x128xf32> to vector<128x128xf32>
    %56 = arith.addf %53, %55 : vector<128x128xf32>
    %cst_36 = arith.constant 0.000000e+00 : f32
    %57 = vector.broadcast %cst_36 : f32 to vector<128x128xf32>
    %58 = arith.maximumf %56, %57 : vector<128x128xf32>
    %59 = arith.truncf %58 : vector<128x128xf32> to vector<128x128xbf16>
    %c1_37 = arith.constant 1 : index
    %c0_38 = arith.constant 0 : index
    %c0_39 = arith.constant 0 : index
    %60 = vector.load %arg8[%c1_37, %c0_38, %c0_39] : memref<2x128x128xbf16, #tpu.memory_space<vmem>>, vector<1x128x128xbf16>
    %61 = vector.shape_cast %60 : vector<1x128x128xbf16> to vector<128x128xbf16>
    %cst_40 = arith.constant dense<0.000000e+00> : vector<128x128xf32>
    %62 = tpu.matmul %59, %61, %cst_40 {dimension_numbers = #tpu.dot_dimension_numbers<[1], [0], [0], [1], [0, 0, 1, 1], [], []>} : vector<128x128xbf16>, vector<128x128xbf16>, vector<128x128xf32> -> vector<128x128xf32>
    %63 = vector.extract_strided_slice %40 {offsets = [1, 0], sizes = [1, 128], strides = [1, 1]} : vector<8x128xf32> to vector<1x128xf32>
    %64 = vector.broadcast %63 : vector<1x128xf32> to vector<128x128xf32>
    %65 = arith.addf %62, %64 : vector<128x128xf32>
    %cst_41 = arith.constant 0.000000e+00 : f32
    %66 = vector.broadcast %cst_41 : f32 to vector<128x128xf32>
    %67 = arith.maximumf %65, %66 : vector<128x128xf32>
    %68 = arith.truncf %67 : vector<128x128xf32> to vector<128x128xbf16>
    %c0_42 = arith.constant 0 : index
    %c0_43 = arith.constant 0 : index
    %c0_44 = arith.constant 0 : index
    %69 = vector.load %arg10[%c0_42, %c0_43, %c0_44] : memref<2x128x128xbf16, #tpu.memory_space<vmem>>, vector<1x128x128xbf16>
    %70 = vector.shape_cast %69 : vector<1x128x128xbf16> to vector<128x128xbf16>
    %cst_45 = arith.constant dense<0.000000e+00> : vector<128x128xf32>
    %71 = tpu.matmul %68, %70, %cst_45 {dimension_numbers = #tpu.dot_dimension_numbers<[1], [0], [0], [1], [0, 0, 1, 1], [], []>} : vector<128x128xbf16>, vector<128x128xbf16>, vector<128x128xf32> -> vector<128x128xf32>
    %cst_46 = arith.constant 0.000000e+00 : f32
    %72 = vector.broadcast %cst_46 : f32 to vector<128x128xf32>
    %73 = arith.maximumf %71, %72 : vector<128x128xf32>
    %74 = arith.truncf %73 : vector<128x128xf32> to vector<128x128xbf16>
    %c1_47 = arith.constant 1 : index
    %c0_48 = arith.constant 0 : index
    %c0_49 = arith.constant 0 : index
    %75 = vector.load %arg10[%c1_47, %c0_48, %c0_49] : memref<2x128x128xbf16, #tpu.memory_space<vmem>>, vector<1x128x128xbf16>
    %76 = vector.shape_cast %75 : vector<1x128x128xbf16> to vector<128x128xbf16>
    %cst_50 = arith.constant dense<0.000000e+00> : vector<128x128xf32>
    %77 = tpu.matmul %74, %76, %cst_50 {dimension_numbers = #tpu.dot_dimension_numbers<[1], [0], [0], [1], [0, 0, 1, 1], [], []>} : vector<128x128xbf16>, vector<128x128xbf16>, vector<128x128xf32> -> vector<128x128xf32>
    %cst_51 = arith.constant 0.000000e+00 : f32
    %78 = vector.broadcast %cst_51 : f32 to vector<128x128xf32>
    %79 = arith.maximumf %77, %78 : vector<128x128xf32>
    %80 = vector.extract_strided_slice %79 {offsets = [0, 0], sizes = [16, 128], strides = [1, 1]} : vector<128x128xf32> to vector<16x128xf32>
    %cst_52 = arith.constant dense<0xFF800000> : vector<128xf32>
    %81 = vector.multi_reduction <maximumf>, %80, %cst_52 [0] : vector<16x128xf32> to vector<128xf32>
    %82 = vector.shape_cast %81 : vector<128xf32> to vector<1x128xf32>
    %83 = vector.broadcast %82 : vector<1x128xf32> to vector<128x128xf32>
    %84 = arith.subf %79, %83 : vector<128x128xf32>
    %85 = math.exp %84 : vector<128x128xf32>
    %c0_53 = arith.constant 0 : index
    %c0_54 = arith.constant 0 : index
    %86 = vector.load %arg4[%c0_53, %c0_54] : memref<128x128xf32, #tpu.memory_space<vmem>>, vector<128x128xf32>
    %cst_55 = arith.constant dense<0.000000e+00> : vector<128x128xf32>
    %87 = tpu.matmul %86, %85, %cst_55 {dimension_numbers = #tpu.dot_dimension_numbers<[1], [0], [0], [1], [0, 0, 1, 1], [], []>} : vector<128x128xf32>, vector<128x128xf32>, vector<128x128xf32> -> vector<128x128xf32>
    %cst_56 = arith.constant 1.000000e-30 : f32
    %88 = vector.broadcast %cst_56 : f32 to vector<128x128xf32>
    %89 = arith.maximumf %87, %88 : vector<128x128xf32>
    %90 = tpu.reciprocal %89 {approx = true} : vector<128x128xf32> -> vector<128x128xf32>
    %91 = arith.mulf %85, %90 : vector<128x128xf32>
    %c0_57 = arith.constant 0 : index
    %c0_58 = arith.constant 0 : index
    %92 = vector.load %arg11[%c0_57, %c0_58] : memref<128x128xf32, #tpu.memory_space<vmem>>, vector<128x128xf32>
    tpu.vector_store %arg11[%c0_57, %c0_58], %91 {strides = array<i32>} : memref<128x128xf32, #tpu.memory_space<vmem>>, vector<128x128xf32>,
    return
  }
}

</mosaic_0001>

<llo_original>
// kernel: position_actor_forward.1
$region0: #{position_actor_forward.1}
  #allocation0 [shape = 'u32[]', space=smem, size = 0x4, offset = 0x4, fixed_abs, tag = 'smem constant byte address 0x4 - core index']
  #allocation1 [shape = 'u32[144,128]{1,0:T(1,128)}', space=vmem, size = 0x12000, scoped, tag = 'internal scratch']
  %s0 = inlined_call_operand.vmem [shape: f32[128,128], index: 0, kind: input, shape index: {}]
  %s1 = inlined_call_operand.vmem [shape: f32[32,128], index: 1, kind: input, shape index: {}]
  %s2 = inlined_call_operand.vmem [shape: bf16[32,128], index: 2, kind: input, shape index: {}]
  %s3 = inlined_call_operand.vmem [shape: bf16[32,128], index: 3, kind: input, shape index: {}]
  %s4 = inlined_call_operand.vmem [shape: f32[128,128], index: 4, kind: input, shape index: {}]
  %s5 = inlined_call_operand.vmem [shape: bf16[128,256], index: 5, kind: input, shape index: {}]
  %s6 = inlined_call_operand.vmem [shape: f32[8,256], index: 6, kind: input, shape index: {}]
  %s7 = inlined_call_operand.vmem [shape: bf16[2,128,128], index: 7, kind: input, shape index: {}]
  %s8 = inlined_call_operand.vmem [shape: bf16[2,128,128], index: 8, kind: input, shape index: {}]
  %s9 = inlined_call_operand.vmem [shape: f32[2,8,128], index: 9, kind: input, shape index: {}]
  %s10 = inlined_call_operand.vmem [shape: bf16[2,128,128], index: 10, kind: input, shape index: {}]
  %s11 = inlined_call_operand.vmem [shape: f32[128,128], index: 11, kind: output, shape index: {}]
  %s12 = sld [smem:[#allocation0]]
  $region54: #{position_actor_forward.1} parent=0
    _
  %s14 = ssub.s32 1, %s12
  %s15 = scalar_select 0, %s14, %s12
  // Predicated region
  $region2: #{position_actor_forward.1} parent=0 // pred_check
    _
  $region3: #{position_actor_forward.1} parent=0 // pred_check_branch
    %17 = sbr.rel (0) target = $region5
  $region4: #{position_actor_forward.1} parent=0 // pred_region
    _
  $region5: #{position_actor_forward.1} parent=0 // pred_fallthru
    _
  // Predicated region
  $region6: #{position_actor_forward.1} parent=0 // pred_check
    _
  $region7: #{position_actor_forward.1} parent=0 // pred_check_branch
    %19 = sbr.rel (0) target = $region9
  $region8: #{position_actor_forward.1} parent=0 // pred_region
    _
  $region9: #{position_actor_forward.1} parent=0 // pred_fallthru
    _
  // Predicated region
  $region10: #{position_actor_forward.1} parent=0 // pred_check
    _
  $region11: #{position_actor_forward.1} parent=0 // pred_check_branch
    %21 = sbr.rel (0) target = $region13
  $region12: #{position_actor_forward.1} parent=0 // pred_region
    _
  $region13: #{position_actor_forward.1} parent=0 // pred_fallthru
    _
  // Predicated region
  $region14: #{position_actor_forward.1} parent=0 // pred_check
    _
  $region15: #{position_actor_forward.1} parent=0 // pred_check_branch
    %23 = sbr.rel (0) target = $region17
  $region16: #{position_actor_forward.1} parent=0 // pred_region
    _
  $region17: #{position_actor_forward.1} parent=0 // pred_fallthru
    _
  // Predicated region
  $region18: #{position_actor_forward.1} parent=0 // pred_check
    _
  $region19: #{position_actor_forward.1} parent=0 // pred_check_branch
    %25 = sbr.rel (0) target = $region21
  $region20: #{position_actor_forward.1} parent=0 // pred_region
    _
  $region21: #{position_actor_forward.1} parent=0 // pred_fallthru
    _
  // Predicated region
  $region22: #{position_actor_forward.1} parent=0 // pred_check
    _
  $region23: #{position_actor_forward.1} parent=0 // pred_check_branch
    %27 = sbr.rel (0) target = $region25
  $region24: #{position_actor_forward.1} parent=0 // pred_region
    _
  $region25: #{position_actor_forward.1} parent=0 // pred_fallthru
    _
  // Predicated region
  $region26: #{position_actor_forward.1} parent=0 // pred_check
    _
  $region27: #{position_actor_forward.1} parent=0 // pred_check_branch
    %29 = sbr.rel (0) target = $region29
  $region28: #{position_actor_forward.1} parent=0 // pred_region
    _
  $region29: #{position_actor_forward.1} parent=0 // pred_fallthru
    _
  // Predicated region
  $region30: #{position_actor_forward.1} parent=0 // pred_check
    _
  $region31: #{position_actor_forward.1} parent=0 // pred_check_branch
    %31 = sbr.rel (0) target = $region33
  $region32: #{position_actor_forward.1} parent=0 // pred_region
    _
  $region33: #{position_actor_forward.1} parent=0 // pred_fallthru
    _
  // Predicated region
  $region34: #{position_actor_forward.1} parent=0 // pred_check
    _
  $region35: #{position_actor_forward.1} parent=0 // pred_check_branch
    %33 = sbr.rel (0) target = $region37
  $region36: #{position_actor_forward.1} parent=0 // pred_region
    _
  $region37: #{position_actor_forward.1} parent=0 // pred_fallthru
    _
  // Predicated region
  $region38: #{position_actor_forward.1} parent=0 // pred_check
    _
  $region39: #{position_actor_forward.1} parent=0 // pred_check_branch
    %35 = sbr.rel (0) target = $region41
  $region40: #{position_actor_forward.1} parent=0 // pred_region
    _
  $region41: #{position_actor_forward.1} parent=0 // pred_fallthru
    _
  // Predicated region
  $region42: #{position_actor_forward.1} parent=0 // pred_check
    _
  $region43: #{position_actor_forward.1} parent=0 // pred_check_branch
    %37 = sbr.rel (0) target = $region45
  $region44: #{position_actor_forward.1} parent=0 // pred_region
    _
  $region45: #{position_actor_forward.1} parent=0 // pred_fallthru
    _
  %v39 = vld [vmem:[%s0] sm:$0xff]
  %v40 = vld [vmem:[%s0 + $0x8] sm:$0xff]
  %v41 = vld [vmem:[%s0 + $0x10] sm:$0xff]
  %v42 = vld [vmem:[%s0 + $0x18] sm:$0xff]
  %v43 = vld [vmem:[%s0 + $0x20] sm:$0xff]
  %v44 = vld [vmem:[%s0 + $0x28] sm:$0xff]
  %v45 = vld [vmem:[%s0 + $0x30] sm:$0xff]
  %v46 = vld [vmem:[%s0 + $0x38] sm:$0xff]
  %v47 = vld [vmem:[%s0 + $0x40] sm:$0xff]
  %v48 = vld [vmem:[%s0 + $0x48] sm:$0xff]
  %v49 = vld [vmem:[%s0 + $0x50] sm:$0xff]
  %v50 = vld [vmem:[%s0 + $0x58] sm:$0xff]
  %v51 = vld [vmem:[%s0 + $0x60] sm:$0xff]
  %v52 = vld [vmem:[%s0 + $0x68] sm:$0xff]
  %v53 = vld [vmem:[%s0 + $0x70] sm:$0xff]
  %v54 = vld [vmem:[%s0 + $0x78] sm:$0xff]
  %v55 = vld [vmem:[%s1] sm:$0xff]
  %v56 = vld [vmem:[%s1 + $0x8] sm:$0xff]
  %v57 = vld [vmem:[%s1 + $0x10] sm:$0xff]
  %v58 = vld [vmem:[%s1 + $0x18] sm:$0xff]
  %v59 = vpack.c.bf16 %v56, %v55
  %v60 = vpack.c.bf16 %v58, %v57
  %v61 = vld [vmem:[%s5] sm:$0xff]
  %v62 = vld [vmem:[%s5 + $0x8] sm:$0xff]
  %v63 = vld [vmem:[%s5 + $0x10] sm:$0xff]
  %v64 = vld [vmem:[%s5 + $0x18] sm:$0xff]
  %v65 = vld [vmem:[%s5 + $0x20] sm:$0xff]
  %v66 = vld [vmem:[%s5 + $0x28] sm:$0xff]
  %v67 = vld [vmem:[%s5 + $0x30] sm:$0xff]
  %v68 = vld [vmem:[%s5 + $0x38] sm:$0xff]
  %v69 = vld [vmem:[%s5 + $0x40] sm:$0xff]
  %v70 = vld [vmem:[%s5 + $0x48] sm:$0xff]
  %v71 = vld [vmem:[%s5 + $0x50] sm:$0xff]
  %v72 = vld [vmem:[%s5 + $0x58] sm:$0xff]
  %v73 = vld [vmem:[%s5 + $0x60] sm:$0xff]
  %v74 = vld [vmem:[%s5 + $0x68] sm:$0xff]
  %v75 = vld [vmem:[%s5 + $0x70] sm:$0xff]
  %v76 = vld [vmem:[%s5 + $0x78] sm:$0xff]
  %v77 = vld [vmem:[%s6] ss:$8 sm:$0x3]
  %v79 = vlaneseq
  %v80 = vshrl.u32 %v79, 7
  %v81 = vsub.s32 0, %v80
  %v82 = vrot.slane %v77, %v81
  %v83 = vlaneseq
  %v84 = vshrl.u32 %v83, 7
  %v85 = vsub.s32 1, %v84
  %v86 = vrot.slane %v77, %v85
  %v105 = vunpack.c.l.b16 %v61
  %v106 = vunpack.c.h.b16 %v61
  %v107 = vunpack.c.l.b16 %v62
  %v108 = vunpack.c.h.b16 %v62
  %v109 = vunpack.c.l.b16 %v63
  %v110 = vunpack.c.h.b16 %v63
  %v111 = vunpack.c.l.b16 %v64
  %v112 = vunpack.c.h.b16 %v64
  %v113 = vunpack.c.l.b16 %v65
  %v114 = vunpack.c.h.b16 %v65
  %v115 = vunpack.c.l.b16 %v66
  %v116 = vunpack.c.h.b16 %v66
  %v117 = vunpack.c.l.b16 %v67
  %v118 = vunpack.c.h.b16 %v67
  %v119 = vunpack.c.l.b16 %v68
  %v120 = vunpack.c.h.b16 %v68
  %v121 = vunpack.c.l.b16 %v69
  %v122 = vunpack.c.h.b16 %v69
  %v123 = vunpack.c.l.b16 %v70
  %v124 = vunpack.c.h.b16 %v70
  %v125 = vunpack.c.l.b16 %v71
  %v126 = vunpack.c.h.b16 %v71
  %v127 = vunpack.c.l.b16 %v72
  %v128 = vunpack.c.h.b16 %v72
  %v129 = vunpack.c.l.b16 %v73
  %v130 = vunpack.c.h.b16 %v73
  %v131 = vunpack.c.l.b16 %v74
  %v132 = vunpack.c.h.b16 %v74
  %v133 = vunpack.c.l.b16 %v75
  %v134 = vunpack.c.h.b16 %v75
  %v135 = vunpack.c.l.b16 %v76
  %v136 = vunpack.c.h.b16 %v76
  %v137 = vpack.c.b16 %v107, %v105
  %v138 = vpack.c.b16 %v108, %v106
  %v139 = vpack.c.b16 %v111, %v109
  %v140 = vpack.c.b16 %v112, %v110
  %v141 = vpack.c.b16 %v115, %v113
  %v142 = vpack.c.b16 %v116, %v114
  %v143 = vpack.c.b16 %v119, %v117
  %v144 = vpack.c.b16 %v120, %v118
  %v145 = vpack.c.b16 %v123, %v121
  %v146 = vpack.c.b16 %v124, %v122
  %v147 = vpack.c.b16 %v127, %v125
  %v148 = vpack.c.b16 %v128, %v126
  %v149 = vpack.c.b16 %v131, %v129
  %v150 = vpack.c.b16 %v132, %v130
  %v151 = vpack.c.b16 %v135, %v133
  %v152 = vpack.c.b16 %v136, %v134
  %169 = vmatprep.subr.bf16.mxu0 %v152
  %170 = vmatpush1.bf16.msra.mxu0 %v151
  %171 = vmatprep.subr.bf16.mxu0 %v150
  %172 = vmatpush1.bf16.msra.mxu0 %v149
  %173 = vmatprep.subr.bf16.mxu0 %v148
  %174 = vmatpush1.bf16.msra.mxu0 %v147
  %175 = vmatprep.subr.bf16.mxu0 %v146
  %176 = vmatpush1.bf16.msra.mxu0 %v145
  %177 = vmatprep.subr.bf16.mxu0 %v144
  %178 = vmatpush1.bf16.msra.mxu0 %v143
  %179 = vmatprep.subr.bf16.mxu0 %v142
  %180 = vmatpush1.bf16.msra.mxu0 %v141
  %181 = vmatprep.subr.bf16.mxu0 %v140
  %182 = vmatpush1.bf16.msra.mxu0 %v139
  %183 = vmatprep.subr.bf16.mxu0 %v138
  %184 = vmatpush1.bf16.msra.mxu0 %v137
  %185 = vmatprep.subr.bf16.mxu0 0
  %186 = vmatpush2.bf16.msra.mxu0 0
  %187 = vmatprep.subr.bf16.mxu0 0
  %188 = vmatpush2.bf16.msra.mxu0 0
  %189 = vmatprep.subr.bf16.mxu0 0
  %190 = vmatpush2.bf16.msra.mxu0 0
  %191 = vmatprep.subr.bf16.mxu0 0
  %192 = vmatpush2.bf16.msra.mxu0 0
  %193 = vmatprep.subr.bf16.mxu0 0
  %194 = vmatpush2.bf16.msra.mxu0 0
  %195 = vmatprep.subr.bf16.mxu0 0
  %196 = vmatpush2.bf16.msra.mxu0 0
  %197 = vmatprep.subr.bf16.mxu0 0
  %198 = vmatpush2.bf16.msra.mxu0 0
  %199 = vmatprep.subr.bf16.mxu0 0
  %200 = vmatpush2.bf16.msra.mxu0 0
  %201 = vmatprep.mubr.bf16.mxu0 0
  %202 = vmatmul.mubr.bf16.gmra.mxu0 %v59
  %v203 = vpop.f32.mrf.mxu0
  %v204 = vadd.f32 %v82, %v203
  %v205 = vpop.f32.mrf.mxu0
  %v206 = vadd.f32 %v86, %v205
  %v207 = vpop.f32.mrf.mxu0
  %v208 = vadd.f32 %v82, %v207
  %v209 = vpop.f32.mrf.mxu0
  %v210 = vadd.f32 %v86, %v209
  %211 = vmatprep.mubr.bf16.mxu0 0
  %212 = vmatmul.mubr.bf16.gmra.mxu0 %v60
  %v213 = vpop.f32.mrf.mxu0
  %v214 = vadd.f32 %v82, %v213
  %v215 = vpop.f32.mrf.mxu0
  %v216 = vadd.f32 %v86, %v215
  %v217 = vpop.f32.mrf.mxu0
  %v218 = vadd.f32 %v82, %v217
  %v219 = vpop.f32.mrf.mxu0
  %v220 = vadd.f32 %v86, %v219
  %221 = vdwg.mxu0
  %v222 = vld [vmem:[%s2] sm:$0xf]
  %v223 = vld [vmem:[%s2 + $0x4] sm:$0xf]
  %v224 = vld [vmem:[%s2 + $0x8] sm:$0xf]
  %v225 = vld [vmem:[%s2 + $0xc] sm:$0xf]
  %v226 = vld [vmem:[%s3] sm:$0xf]
  %v227 = vld [vmem:[%s3 + $0x4] sm:$0xf]
  %v228 = vld [vmem:[%s3 + $0x8] sm:$0xf]
  %v229 = vld [vmem:[%s3 + $0xc] sm:$0xf]
  %v230 = vld [vmem:[%s9] sm:$0xff]
  %v231 = vpack.c.bf16 %v40, %v39
  %v232 = vpack.c.bf16 %v42, %v41
  %v233 = vpack.c.bf16 %v44, %v43
  %v234 = vpack.c.bf16 %v46, %v45
  %v235 = vpack.c.bf16 %v48, %v47
  %v236 = vpack.c.bf16 %v50, %v49
  %v237 = vpack.c.bf16 %v52, %v51
  %v238 = vpack.c.bf16 %v54, %v53
  %v243 = vunpack.c.l.b16 %v222
  %v244 = vunpack.c.l.b16 %v223
  %v245 = vunpack.c.l.b16 %v224
  %v246 = vunpack.c.l.b16 %v225
  %v247 = vpack.c.b16 %v244, %v243
  %v248 = vpack.c.b16 %v246, %v245
  %251 = vmatprep.subr.bf16.mxu0 0
  %252 = vmatpush1.bf16.msra.mxu0 %v238
  %253 = vmatprep.subr.bf16.mxu0 0
  %254 = vmatpush1.bf16.msra.mxu0 %v237
  %255 = vmatprep.subr.bf16.mxu0 0
  %256 = vmatpush1.bf16.msra.mxu0 %v236
  %257 = vmatprep.subr.bf16.mxu0 0
  %258 = vmatpush1.bf16.msra.mxu0 %v235
  %259 = vmatprep.subr.bf16.mxu0 0
  %260 = vmatpush1.bf16.msra.mxu0 %v234
  %261 = vmatprep.subr.bf16.mxu0 0
  %262 = vmatpush1.bf16.msra.mxu0 %v233
  %263 = vmatprep.subr.bf16.mxu0 0
  %264 = vmatpush1.bf16.msra.mxu0 %v232
  %265 = vmatprep.subr.bf16.mxu0 0
  %266 = vmatpush1.bf16.msra.mxu0 %v231
  %267 = vmatprep.subr.bf16.mxu0 0
  %268 = vmatpush2.bf16.msra.mxu0 0
  %269 = vmatprep.subr.bf16.mxu0 0
  %270 = vmatpush2.bf16.msra.mxu0 0
  %271 = vmatprep.subr.bf16.mxu0 0
  %272 = vmatpush2.bf16.msra.mxu0 0
  %273 = vmatprep.subr.bf16.mxu0 0
  %274 = vmatpush2.bf16.msra.mxu0 0
  %275 = vmatprep.subr.bf16.mxu0 0
  %276 = vmatpush2.bf16.msra.mxu0 0
  %277 = vmatprep.subr.bf16.mxu0 0
  %278 = vmatpush2.bf16.msra.mxu0 0
  %279 = vmatprep.subr.bf16.mxu0 0
  %280 = vmatpush2.bf16.msra.mxu0 0
  %281 = vmatprep.subr.bf16.mxu0 0
  %282 = vmatpush2.bf16.msra.mxu0 0
  %283 = vmatprep.mubr.bf16.mxu0 0
  %284 = vmatmul.mubr.bf16.gmra.mxu0 %v247
  %v285 = vpop.f32.mrf.mxu0
  %v286 = vadd.f32 %v204, %v285
  %v287 = vpop.f32.mrf.mxu0
  %v288 = vpop.f32.mrf.mxu0
  %v289 = vadd.f32 %v208, %v288
  %v290 = vpop.f32.mrf.mxu0
  %291 = vmatprep.mubr.bf16.mxu0 0
  %292 = vmatmul.mubr.bf16.gmra.mxu0 %v248
  %v293 = vpop.f32.mrf.mxu0
  %v294 = vadd.f32 %v214, %v293
  %v295 = vpop.f32.mrf.mxu0
  %v296 = vpop.f32.mrf.mxu0
  %v297 = vadd.f32 %v218, %v296
  %v298 = vpop.f32.mrf.mxu0
  %299 = vdwg.mxu0
  %v300 = vmax.f32 %v286, 0.0
  %v301 = vmax.f32 %v289, 0.0
  %v302 = vmax.f32 %v294, 0.0
  %v303 = vmax.f32 %v297, 0.0
  %v304 = vpack.c.bf16 %v301, %v300
  %v305 = vpack.c.bf16 %v303, %v302
  %v310 = vunpack.c.l.b16 %v226
  %v311 = vunpack.c.l.b16 %v227
  %v312 = vunpack.c.l.b16 %v228
  %v313 = vunpack.c.l.b16 %v229
  %v314 = vpack.c.b16 %v311, %v310
  %v315 = vpack.c.b16 %v313, %v312
  %318 = vxpose.xlu0.c.b16.start [1/8] %v314, 128
  %319 = vxpose.xlu0.c.b16.cont [2/8] %v315, 128
  %320 = vxpose.xlu0.c.b16.cont [3/8] 0, 128
  %321 = vxpose.xlu0.c.b16.cont [4/8] 0, 128
  %322 = vxpose.xlu0.c.b16.cont [5/8] 0, 128
  %323 = vxpose.xlu0.c.b16.cont [6/8] 0, 128
  %324 = vxpose.xlu0.c.b16.cont [7/8] 0, 128
  %325 = vxpose.xlu0.c.b16.end [8/8] 0, 128
  %v326 = vpop.trf.xlu0
  %v327 = vpop.trf.xlu0
  %v328 = vpop.trf.xlu0
  %v329 = vpop.trf.xlu0
  %v330 = vpop.trf.xlu0
  %v331 = vpop.trf.xlu0
  %v332 = vpop.trf.xlu0
  %v333 = vpop.trf.xlu0
  %vm334 = vcmask 261120
  %v336 = vsel %vm334, %v326, 0
  %v339 = vsel %vm334, %v327, 0
  %v342 = vsel %vm334, %v328, 0
  %v345 = vsel %vm334, %v329, 0
  %v348 = vsel %vm334, %v330, 0
  %v351 = vsel %vm334, %v331, 0
  %v354 = vsel %vm334, %v332, 0
  %v357 = vsel %vm334, %v333, 0
  %359 = vmatprep.subr.bf16.mxu0 0
  %360 = vmatpush1.bf16.msra.mxu0 0
  %361 = vmatprep.subr.bf16.mxu0 0
  %362 = vmatpush1.bf16.msra.mxu0 0
  %363 = vmatprep.subr.bf16.mxu0 0
  %364 = vmatpush1.bf16.msra.mxu0 0
  %365 = vmatprep.subr.bf16.mxu0 0
  %366 = vmatpush1.bf16.msra.mxu0 0
  %367 = vmatprep.subr.bf16.mxu0 0
  %368 = vmatpush1.bf16.msra.mxu0 0
  %369 = vmatprep.subr.bf16.mxu0 0
  %370 = vmatpush1.bf16.msra.mxu0 0
  %371 = vmatprep.subr.bf16.mxu0 0
  %372 = vmatpush1.bf16.msra.mxu0 %v305
  %373 = vmatprep.subr.bf16.mxu0 0
  %374 = vmatpush1.bf16.msra.mxu0 %v304
  %375 = vmatprep.subr.bf16.mxu0 0
  %376 = vmatpush2.bf16.msra.mxu0 0
  %377 = vmatprep.subr.bf16.mxu0 0
  %378 = vmatpush2.bf16.msra.mxu0 0
  %379 = vmatprep.subr.bf16.mxu0 0
  %380 = vmatpush2.bf16.msra.mxu0 0
  %381 = vmatprep.subr.bf16.mxu0 0
  %382 = vmatpush2.bf16.msra.mxu0 0
  %383 = vmatprep.subr.bf16.mxu0 0
  %384 = vmatpush2.bf16.msra.mxu0 0
  %385 = vmatprep.subr.bf16.mxu0 0
  %386 = vmatpush2.bf16.msra.mxu0 0
  %387 = vmatprep.subr.bf16.mxu0 0
  %388 = vmatpush2.bf16.msra.mxu0 0
  %389 = vmatprep.subr.bf16.mxu0 0
  %390 = vmatpush2.bf16.msra.mxu0 0
  %391 = vmatprep.mubr.bf16.mxu0 0
  %392 = vmatmul.mubr.bf16.gmra.mxu0 %v336
  %v393 = vpop.f32.mrf.mxu0
  %v394 = vadd.f32 0.0, %v393
  %v395 = vpop.f32.mrf.mxu0
  %v396 = vpop.f32.mrf.mxu0
  %v397 = vadd.f32 0.0, %v396
  %v398 = vpop.f32.mrf.mxu0
  %399 = vmatprep.mubr.bf16.mxu0 0
  %400 = vmatmul.mubr.bf16.gmra.mxu0 %v339
  %v401 = vpop.f32.mrf.mxu0
  %v402 = vadd.f32 0.0, %v401
  %v403 = vpop.f32.mrf.mxu0
  %v404 = vpop.f32.mrf.mxu0
  %v405 = vadd.f32 0.0, %v404
  %v406 = vpop.f32.mrf.mxu0
  %407 = vmatprep.mubr.bf16.mxu0 0
  %408 = vmatmul.mubr.bf16.gmra.mxu0 %v342
  %v409 = vpop.f32.mrf.mxu0
  %v410 = vadd.f32 0.0, %v409
  %v411 = vpop.f32.mrf.mxu0
  %v412 = vpop.f32.mrf.mxu0
  %v413 = vadd.f32 0.0, %v412
  %v414 = vpop.f32.mrf.mxu0
  %415 = vmatprep.mubr.bf16.mxu0 0
  %416 = vmatmul.mubr.bf16.gmra.mxu0 %v345
  %v417 = vpop.f32.mrf.mxu0
  %v418 = vadd.f32 0.0, %v417
  %v419 = vpop.f32.mrf.mxu0
  %v420 = vpop.f32.mrf.mxu0
  %v421 = vadd.f32 0.0, %v420
  %v422 = vpop.f32.mrf.mxu0
  %423 = vmatprep.mubr.bf16.mxu0 0
  %424 = vmatmul.mubr.bf16.gmra.mxu0 %v348
  %v425 = vpop.f32.mrf.mxu0
  %v426 = vadd.f32 0.0, %v425
  %v427 = vpop.f32.mrf.mxu0
  %v428 = vpop.f32.mrf.mxu0
  %v429 = vadd.f32 0.0, %v428
  %v430 = vpop.f32.mrf.mxu0
  %431 = vmatprep.mubr.bf16.mxu0 0
  %432 = vmatmul.mubr.bf16.gmra.mxu0 %v351
  %v433 = vpop.f32.mrf.mxu0
  %v434 = vadd.f32 0.0, %v433
  %v435 = vpop.f32.mrf.mxu0
  %v436 = vpop.f32.mrf.mxu0
  %v437 = vadd.f32 0.0, %v436
  %v438 = vpop.f32.mrf.mxu0
  %439 = vmatprep.mubr.bf16.mxu0 0
  %440 = vmatmul.mubr.bf16.gmra.mxu0 %v354
  %v441 = vpop.f32.mrf.mxu0
  %v442 = vadd.f32 0.0, %v441
  %v443 = vpop.f32.mrf.mxu0
  %v444 = vpop.f32.mrf.mxu0
  %v445 = vadd.f32 0.0, %v444
  %v446 = vpop.f32.mrf.mxu0
  %447 = vmatprep.mubr.bf16.mxu0 0
  %448 = vmatmul.mubr.bf16.gmra.mxu0 %v357
  %v449 = vpop.f32.mrf.mxu0
  %v450 = vadd.f32 0.0, %v449
  %v451 = vpop.f32.mrf.mxu0
  %v452 = vpop.f32.mrf.mxu0
  %v453 = vadd.f32 0.0, %v452
  %v454 = vpop.f32.mrf.mxu0
  %455 = vdwg.mxu0
  %v456 = vadd.f32 %v39, %v394
  %v457 = vadd.f32 %v40, %v397
  %v458 = vadd.f32 %v41, %v402
  %v459 = vadd.f32 %v42, %v405
  %v460 = vadd.f32 %v43, %v410
  %v461 = vadd.f32 %v44, %v413
  %v462 = vadd.f32 %v45, %v418
  %v463 = vadd.f32 %v46, %v421
  %v464 = vadd.f32 %v47, %v426
  %v465 = vadd.f32 %v48, %v429
  %v466 = vadd.f32 %v49, %v434
  %v467 = vadd.f32 %v50, %v437
  %v468 = vadd.f32 %v51, %v442
  %v469 = vadd.f32 %v52, %v445
  %v470 = vadd.f32 %v53, %v450
  %v471 = vadd.f32 %v54, %v453
  %v472 = vpack.c.bf16 %v457, %v456
  %v473 = vpack.c.bf16 %v459, %v458
  %v474 = vpack.c.bf16 %v461, %v460
  %v475 = vpack.c.bf16 %v463, %v462
  %v476 = vpack.c.bf16 %v465, %v464
  %v477 = vpack.c.bf16 %v467, %v466
  %v478 = vpack.c.bf16 %v469, %v468
  %v479 = vpack.c.bf16 %v471, %v470
  %v480 = vld [vmem:[%s7] sm:$0xf]
  %v481 = vld [vmem:[%s7 + $0x4] sm:$0xf]
  %v482 = vld [vmem:[%s7 + $0x8] sm:$0xf]
  %v483 = vld [vmem:[%s7 + $0xc] sm:$0xf]
  %v484 = vld [vmem:[%s7 + $0x10] sm:$0xf]
  %v485 = vld [vmem:[%s7 + $0x14] sm:$0xf]
  %v486 = vld [vmem:[%s7 + $0x18] sm:$0xf]
  %v487 = vld [vmem:[%s7 + $0x1c] sm:$0xf]
  %v488 = vld [vmem:[%s7 + $0x20] sm:$0xf]
  %v489 = vld [vmem:[%s7 + $0x24] sm:$0xf]
  %v490 = vld [vmem:[%s7 + $0x28] sm:$0xf]
  %v491 = vld [vmem:[%s7 + $0x2c] sm:$0xf]
  %v492 = vld [vmem:[%s7 + $0x30] sm:$0xf]
  %v493 = vld [vmem:[%s7 + $0x34] sm:$0xf]
  %v494 = vld [vmem:[%s7 + $0x38] sm:$0xf]
  %v495 = vld [vmem:[%s7 + $0x3c] sm:$0xf]
  %v496 = vlaneseq
  %v497 = vshrl.u32 %v496, 7
  %v498 = vsub.s32 0, %v497
  %v499 = vrot.slane %v230, %v498
  %v516 = vunpack.c.l.b16 %v480
  %v517 = vunpack.c.l.b16 %v481
  %v518 = vunpack.c.l.b16 %v482
  %v519 = vunpack.c.l.b16 %v483
  %v520 = vunpack.c.l.b16 %v484
  %v521 = vunpack.c.l.b16 %v485
  %v522 = vunpack.c.l.b16 %v486
  %v523 = vunpack.c.l.b16 %v487
  %v524 = vunpack.c.l.b16 %v488
  %v525 = vunpack.c.l.b16 %v489
  %v526 = vunpack.c.l.b16 %v490
  %v527 = vunpack.c.l.b16 %v491
  %v528 = vunpack.c.l.b16 %v492
  %v529 = vunpack.c.l.b16 %v493
  %v530 = vunpack.c.l.b16 %v494
  %v531 = vunpack.c.l.b16 %v495
  %v532 = vpack.c.b16 %v517, %v516
  %v533 = vpack.c.b16 %v519, %v518
  %v534 = vpack.c.b16 %v521, %v520
  %v535 = vpack.c.b16 %v523, %v522
  %v536 = vpack.c.b16 %v525, %v524
  %v537 = vpack.c.b16 %v527, %v526
  %v538 = vpack.c.b16 %v529, %v528
  %v539 = vpack.c.b16 %v531, %v530
  %548 = vmatprep.subr.bf16.mxu0 0
  %549 = vmatpush1.bf16.msra.mxu0 %v539
  %550 = vmatprep.subr.bf16.mxu0 0
  %551 = vmatpush1.bf16.msra.mxu0 %v538
  %552 = vmatprep.subr.bf16.mxu0 0
  %553 = vmatpush1.bf16.msra.mxu0 %v537
  %554 = vmatprep.subr.bf16.mxu0 0
  %555 = vmatpush1.bf16.msra.mxu0 %v536
  %556 = vmatprep.subr.bf16.mxu0 0
  %557 = vmatpush1.bf16.msra.mxu0 %v535
  %558 = vmatprep.subr.bf16.mxu0 0
  %559 = vmatpush1.bf16.msra.mxu0 %v534
  %560 = vmatprep.subr.bf16.mxu0 0
  %561 = vmatpush1.bf16.msra.mxu0 %v533
  %562 = vmatprep.subr.bf16.mxu0 0
  %563 = vmatpush1.bf16.msra.mxu0 %v532
  %564 = vmatprep.subr.bf16.mxu0 0
  %565 = vmatpush2.bf16.msra.mxu0 0
  %566 = vmatprep.subr.bf16.mxu0 0
  %567 = vmatpush2.bf16.msra.mxu0 0
  %568 = vmatprep.subr.bf16.mxu0 0
  %569 = vmatpush2.bf16.msra.mxu0 0
  %570 = vmatprep.subr.bf16.mxu0 0
  %571 = vmatpush2.bf16.msra.mxu0 0
  %572 = vmatprep.subr.bf16.mxu0 0
  %573 = vmatpush2.bf16.msra.mxu0 0
  %574 = vmatprep.subr.bf16.mxu0 0
  %575 = vmatpush2.bf16.msra.mxu0 0
  %576 = vmatprep.subr.bf16.mxu0 0
  %577 = vmatpush2.bf16.msra.mxu0 0
  %578 = vmatprep.subr.bf16.mxu0 0
  %579 = vmatpush2.bf16.msra.mxu0 0
  %580 = vmatprep.mubr.bf16.mxu0 0
  %581 = vmatmul.mubr.bf16.gmra.mxu0 %v472
  %v582 = vpop.f32.mrf.mxu0
  %v583 = vadd.f32 %v499, %v582
  %v584 = vpop.f32.mrf.mxu0
  %v585 = vpop.f32.mrf.mxu0
  %v586 = vadd.f32 %v499, %v585
  %v587 = vpop.f32.mrf.mxu0
  %588 = vmatprep.mubr.bf16.mxu0 0
  %589 = vmatmul.mubr.bf16.gmra.mxu0 %v473
  %v590 = vpop.f32.mrf.mxu0
  %v591 = vadd.f32 %v499, %v590
  %v592 = vpop.f32.mrf.mxu0
  %v593 = vpop.f32.mrf.mxu0
  %v594 = vadd.f32 %v499, %v593
  %v595 = vpop.f32.mrf.mxu0
  %596 = vmatprep.mubr.bf16.mxu0 0
  %597 = vmatmul.mubr.bf16.gmra.mxu0 %v474
  %v598 = vpop.f32.mrf.mxu0
  %v599 = vadd.f32 %v499, %v598
  %v600 = vpop.f32.mrf.mxu0
  %v601 = vpop.f32.mrf.mxu0
  %v602 = vadd.f32 %v499, %v601
  %v603 = vpop.f32.mrf.mxu0
  %604 = vmatprep.mubr.bf16.mxu0 0
  %605 = vmatmul.mubr.bf16.gmra.mxu0 %v475
  %v606 = vpop.f32.mrf.mxu0
  %v607 = vadd.f32 %v499, %v606
  %v608 = vpop.f32.mrf.mxu0
  %v609 = vpop.f32.mrf.mxu0
  %v610 = vadd.f32 %v499, %v609
  %v611 = vpop.f32.mrf.mxu0
  %612 = vmatprep.mubr.bf16.mxu0 0
  %613 = vmatmul.mubr.bf16.gmra.mxu0 %v476
  %v614 = vpop.f32.mrf.mxu0
  %v615 = vadd.f32 %v499, %v614
  %v616 = vpop.f32.mrf.mxu0
  %v617 = vpop.f32.mrf.mxu0
  %v618 = vadd.f32 %v499, %v617
  %v619 = vpop.f32.mrf.mxu0
  %620 = vmatprep.mubr.bf16.mxu0 0
  %621 = vmatmul.mubr.bf16.gmra.mxu0 %v477
  %v622 = vpop.f32.mrf.mxu0
  %v623 = vadd.f32 %v499, %v622
  %v624 = vpop.f32.mrf.mxu0
  %v625 = vpop.f32.mrf.mxu0
  %v626 = vadd.f32 %v499, %v625
  %v627 = vpop.f32.mrf.mxu0
  %628 = vmatprep.mubr.bf16.mxu0 0
  %629 = vmatmul.mubr.bf16.gmra.mxu0 %v478
  %v630 = vpop.f32.mrf.mxu0
  %v631 = vadd.f32 %v499, %v630
  %v632 = vpop.f32.mrf.mxu0
  %v633 = vpop.f32.mrf.mxu0
  %v634 = vadd.f32 %v499, %v633
  %v635 = vpop.f32.mrf.mxu0
  %636 = vmatprep.mubr.bf16.mxu0 0
  %637 = vmatmul.mubr.bf16.gmra.mxu0 %v479
  %v638 = vpop.f32.mrf.mxu0
  %v639 = vadd.f32 %v499, %v638
  %v640 = vpop.f32.mrf.mxu0
  %v641 = vpop.f32.mrf.mxu0
  %v642 = vadd.f32 %v499, %v641
  %v643 = vpop.f32.mrf.mxu0
  %644 = vdwg.mxu0
  %v645 = vmax.f32 %v583, 0.0
  %v646 = vmax.f32 %v586, 0.0
  %v647 = vmax.f32 %v591, 0.0
  %v648 = vmax.f32 %v594, 0.0
  %v649 = vmax.f32 %v599, 0.0
  %v650 = vmax.f32 %v602, 0.0
  %v651 = vmax.f32 %v607, 0.0
  %v652 = vmax.f32 %v610, 0.0
  %v653 = vmax.f32 %v615, 0.0
  %v654 = vmax.f32 %v618, 0.0
  %v655 = vmax.f32 %v623, 0.0
  %v656 = vmax.f32 %v626, 0.0
  %v657 = vmax.f32 %v631, 0.0
  %v658 = vmax.f32 %v634, 0.0
  %v659 = vmax.f32 %v639, 0.0
  %v660 = vmax.f32 %v642, 0.0
  %v661 = vpack.c.bf16 %v646, %v645
  %v662 = vpack.c.bf16 %v648, %v647
  %v663 = vpack.c.bf16 %v650, %v649
  %v664 = vpack.c.bf16 %v652, %v651
  %v665 = vpack.c.bf16 %v654, %v653
  %v666 = vpack.c.bf16 %v656, %v655
  %v667 = vpack.c.bf16 %v658, %v657
  %v668 = vpack.c.bf16 %v660, %v659
  %v669 = vld [vmem:[%s8] sm:$0xf]
  %v670 = vld [vmem:[%s8 + $0x4] sm:$0xf]
  %v671 = vld [vmem:[%s8 + $0x8] sm:$0xf]
  %v672 = vld [vmem:[%s8 + $0xc] sm:$0xf]
  %v673 = vld [vmem:[%s8 + $0x10] sm:$0xf]
  %v674 = vld [vmem:[%s8 + $0x14] sm:$0xf]
  %v675 = vld [vmem:[%s8 + $0x18] sm:$0xf]
  %v676 = vld [vmem:[%s8 + $0x1c] sm:$0xf]
  %v677 = vld [vmem:[%s8 + $0x20] sm:$0xf]
  %v678 = vld [vmem:[%s8 + $0x24] sm:$0xf]
  %v679 = vld [vmem:[%s8 + $0x28] sm:$0xf]
  %v680 = vld [vmem:[%s8 + $0x2c] sm:$0xf]
  %v681 = vld [vmem:[%s8 + $0x30] sm:$0xf]
  %v682 = vld [vmem:[%s8 + $0x34] sm:$0xf]
  %v683 = vld [vmem:[%s8 + $0x38] sm:$0xf]
  %v684 = vld [vmem:[%s8 + $0x3c] sm:$0xf]
  %v685 = vlaneseq
  %v686 = vshrl.u32 %v685, 7
  %v687 = vsub.s32 1, %v686
  %v688 = vrot.slane %v230, %v687
  %v705 = vunpack.c.l.b16 %v669
  %v706 = vunpack.c.l.b16 %v670
  %v707 = vunpack.c.l.b16 %v671
  %v708 = vunpack.c.l.b16 %v672
  %v709 = vunpack.c.l.b16 %v673
  %v710 = vunpack.c.l.b16 %v674
  %v711 = vunpack.c.l.b16 %v675
  %v712 = vunpack.c.l.b16 %v676
  %v713 = vunpack.c.l.b16 %v677
  %v714 = vunpack.c.l.b16 %v678
  %v715 = vunpack.c.l.b16 %v679
  %v716 = vunpack.c.l.b16 %v680
  %v717 = vunpack.c.l.b16 %v681
  %v718 = vunpack.c.l.b16 %v682
  %v719 = vunpack.c.l.b16 %v683
  %v720 = vunpack.c.l.b16 %v684
  %v721 = vpack.c.b16 %v706, %v705
  %v722 = vpack.c.b16 %v708, %v707
  %v723 = vpack.c.b16 %v710, %v709
  %v724 = vpack.c.b16 %v712, %v711
  %v725 = vpack.c.b16 %v714, %v713
  %v726 = vpack.c.b16 %v716, %v715
  %v727 = vpack.c.b16 %v718, %v717
  %v728 = vpack.c.b16 %v720, %v719
  %737 = vmatprep.subr.bf16.mxu0 0
  %738 = vmatpush1.bf16.msra.mxu0 %v728
  %739 = vmatprep.subr.bf16.mxu0 0
  %740 = vmatpush1.bf16.msra.mxu0 %v727
  %741 = vmatprep.subr.bf16.mxu0 0
  %742 = vmatpush1.bf16.msra.mxu0 %v726
  %743 = vmatprep.subr.bf16.mxu0 0
  %744 = vmatpush1.bf16.msra.mxu0 %v725
  %745 = vmatprep.subr.bf16.mxu0 0
  %746 = vmatpush1.bf16.msra.mxu0 %v724
  %747 = vmatprep.subr.bf16.mxu0 0
  %748 = vmatpush1.bf16.msra.mxu0 %v723
  %749 = vmatprep.subr.bf16.mxu0 0
  %750 = vmatpush1.bf16.msra.mxu0 %v722
  %751 = vmatprep.subr.bf16.mxu0 0
  %752 = vmatpush1.bf16.msra.mxu0 %v721
  %753 = vmatprep.subr.bf16.mxu0 0
  %754 = vmatpush2.bf16.msra.mxu0 0
  %755 = vmatprep.subr.bf16.mxu0 0
  %756 = vmatpush2.bf16.msra.mxu0 0
  %757 = vmatprep.subr.bf16.mxu0 0
  %758 = vmatpush2.bf16.msra.mxu0 0
  %759 = vmatprep.subr.bf16.mxu0 0
  %760 = vmatpush2.bf16.msra.mxu0 0
  %761 = vmatprep.subr.bf16.mxu0 0
  %762 = vmatpush2.bf16.msra.mxu0 0
  %763 = vmatprep.subr.bf16.mxu0 0
  %764 = vmatpush2.bf16.msra.mxu0 0
  %765 = vmatprep.subr.bf16.mxu0 0
  %766 = vmatpush2.bf16.msra.mxu0 0
  %767 = vmatprep.subr.bf16.mxu0 0
  %768 = vmatpush2.bf16.msra.mxu0 0
  %769 = vmatprep.mubr.bf16.mxu0 0
  %770 = vmatmul.mubr.bf16.gmra.mxu0 %v661
  %v771 = vpop.f32.mrf.mxu0
  %v772 = vadd.f32 %v688, %v771
  %v773 = vpop.f32.mrf.mxu0
  %v774 = vpop.f32.mrf.mxu0
  %v775 = vadd.f32 %v688, %v774
  %v776 = vpop.f32.mrf.mxu0
  %777 = vmatprep.mubr.bf16.mxu0 0
  %778 = vmatmul.mubr.bf16.gmra.mxu0 %v662
  %v779 = vpop.f32.mrf.mxu0
  %v780 = vadd.f32 %v688, %v779
  %v781 = vpop.f32.mrf.mxu0
  %v782 = vpop.f32.mrf.mxu0
  %v783 = vadd.f32 %v688, %v782
  %v784 = vpop.f32.mrf.mxu0
  %785 = vmatprep.mubr.bf16.mxu0 0
  %786 = vmatmul.mubr.bf16.gmra.mxu0 %v663
  %v787 = vpop.f32.mrf.mxu0
  %v788 = vadd.f32 %v688, %v787
  %v789 = vpop.f32.mrf.mxu0
  %v790 = vpop.f32.mrf.mxu0
  %v791 = vadd.f32 %v688, %v790
  %v792 = vpop.f32.mrf.mxu0
  %793 = vmatprep.mubr.bf16.mxu0 0
  %794 = vmatmul.mubr.bf16.gmra.mxu0 %v664
  %v795 = vpop.f32.mrf.mxu0
  %v796 = vadd.f32 %v688, %v795
  %v797 = vpop.f32.mrf.mxu0
  %v798 = vpop.f32.mrf.mxu0
  %v799 = vadd.f32 %v688, %v798
  %v800 = vpop.f32.mrf.mxu0
  %801 = vmatprep.mubr.bf16.mxu0 0
  %802 = vmatmul.mubr.bf16.gmra.mxu0 %v665
  %v803 = vpop.f32.mrf.mxu0
  %v804 = vadd.f32 %v688, %v803
  %v805 = vpop.f32.mrf.mxu0
  %v806 = vpop.f32.mrf.mxu0
  %v807 = vadd.f32 %v688, %v806
  %v808 = vpop.f32.mrf.mxu0
  %809 = vmatprep.mubr.bf16.mxu0 0
  %810 = vmatmul.mubr.bf16.gmra.mxu0 %v666
  %v811 = vpop.f32.mrf.mxu0
  %v812 = vadd.f32 %v688, %v811
  %v813 = vpop.f32.mrf.mxu0
  %v814 = vpop.f32.mrf.mxu0
  %v815 = vadd.f32 %v688, %v814
  %v816 = vpop.f32.mrf.mxu0
  %817 = vmatprep.mubr.bf16.mxu0 0
  %818 = vmatmul.mubr.bf16.gmra.mxu0 %v667
  %v819 = vpop.f32.mrf.mxu0
  %v820 = vadd.f32 %v688, %v819
  %v821 = vpop.f32.mrf.mxu0
  %v822 = vpop.f32.mrf.mxu0
  %v823 = vadd.f32 %v688, %v822
  %v824 = vpop.f32.mrf.mxu0
  %825 = vmatprep.mubr.bf16.mxu0 0
  %826 = vmatmul.mubr.bf16.gmra.mxu0 %v668
  %v827 = vpop.f32.mrf.mxu0
  %v828 = vadd.f32 %v688, %v827
  %v829 = vpop.f32.mrf.mxu0
  %v830 = vpop.f32.mrf.mxu0
  %v831 = vadd.f32 %v688, %v830
  %v832 = vpop.f32.mrf.mxu0
  %833 = vdwg.mxu0
  %v834 = vmax.f32 %v772, 0.0
  %v835 = vmax.f32 %v775, 0.0
  %v836 = vmax.f32 %v780, 0.0
  %v837 = vmax.f32 %v783, 0.0
  %v838 = vmax.f32 %v788, 0.0
  %v839 = vmax.f32 %v791, 0.0
  %v840 = vmax.f32 %v796, 0.0
  %v841 = vmax.f32 %v799, 0.0
  %v842 = vmax.f32 %v804, 0.0
  %v843 = vmax.f32 %v807, 0.0
  %v844 = vmax.f32 %v812, 0.0
  %v845 = vmax.f32 %v815, 0.0
  %v846 = vmax.f32 %v820, 0.0
  %v847 = vmax.f32 %v823, 0.0
  %v848 = vmax.f32 %v828, 0.0
  %v849 = vmax.f32 %v831, 0.0
  %s850 = scalar_lea.vmem %s9, 8
  %v851 = vld [vmem:[%s850] sm:$0xff]
  %v852 = vpack.c.bf16 %v835, %v834
  %v853 = vpack.c.bf16 %v837, %v836
  %v854 = vpack.c.bf16 %v839, %v838
  %v855 = vpack.c.bf16 %v841, %v840
  %v856 = vpack.c.bf16 %v843, %v842
  %v857 = vpack.c.bf16 %v845, %v844
  %v858 = vpack.c.bf16 %v847, %v846
  %v859 = vpack.c.bf16 %v849, %v848
  %860 = vmatprep.subr.bf16.mxu0 0
  %861 = vmatpush1.bf16.msra.mxu0 %v859
  %862 = vmatprep.subr.bf16.mxu0 0
  %863 = vmatpush1.bf16.msra.mxu0 %v858
  %864 = vmatprep.subr.bf16.mxu0 0
  %865 = vmatpush1.bf16.msra.mxu0 %v857
  %866 = vmatprep.subr.bf16.mxu0 0
  %867 = vmatpush1.bf16.msra.mxu0 %v856
  %868 = vmatprep.subr.bf16.mxu0 0
  %869 = vmatpush1.bf16.msra.mxu0 %v855
  %870 = vmatprep.subr.bf16.mxu0 0
  %871 = vmatpush1.bf16.msra.mxu0 %v854
  %872 = vmatprep.subr.bf16.mxu0 0
  %873 = vmatpush1.bf16.msra.mxu0 %v853
  %874 = vmatprep.subr.bf16.mxu0 0
  %875 = vmatpush1.bf16.msra.mxu0 %v852
  %876 = vmatprep.subr.bf16.mxu0 0
  %877 = vmatpush2.bf16.msra.mxu0 0
  %878 = vmatprep.subr.bf16.mxu0 0
  %879 = vmatpush2.bf16.msra.mxu0 0
  %880 = vmatprep.subr.bf16.mxu0 0
  %881 = vmatpush2.bf16.msra.mxu0 0
  %882 = vmatprep.subr.bf16.mxu0 0
  %883 = vmatpush2.bf16.msra.mxu0 0
  %884 = vmatprep.subr.bf16.mxu0 0
  %885 = vmatpush2.bf16.msra.mxu0 0
  %886 = vmatprep.subr.bf16.mxu0 0
  %887 = vmatpush2.bf16.msra.mxu0 0
  %888 = vmatprep.subr.bf16.mxu0 0
  %889 = vmatpush2.bf16.msra.mxu0 0
  %890 = vmatprep.subr.bf16.mxu0 0
  %891 = vmatpush2.bf16.msra.mxu0 0
  %892 = vmatprep.mubr.bf16.mxu0 0
  %893 = vmatmul.mubr.bf16.gmra.mxu0 %v247
  %v894 = vpop.f32.mrf.mxu0
  %v895 = vadd.f32 %v206, %v894
  %v896 = vpop.f32.mrf.mxu0
  %v897 = vpop.f32.mrf.mxu0
  %v898 = vadd.f32 %v210, %v897
  %v899 = vpop.f32.mrf.mxu0
  %900 = vmatprep.mubr.bf16.mxu0 0
  %901 = vmatmul.mubr.bf16.gmra.mxu0 %v248
  %v902 = vpop.f32.mrf.mxu0
  %v903 = vadd.f32 %v216, %v902
  %v904 = vpop.f32.mrf.mxu0
  %v905 = vpop.f32.mrf.mxu0
  %v906 = vadd.f32 %v220, %v905
  %v907 = vpop.f32.mrf.mxu0
  %908 = vdwg.mxu0
  %v909 = vmax.f32 %v895, 0.0
  %v910 = vmax.f32 %v898, 0.0
  %v911 = vmax.f32 %v903, 0.0
  %v912 = vmax.f32 %v906, 0.0
  %v913 = vpack.c.bf16 %v910, %v909
  %v914 = vpack.c.bf16 %v912, %v911
  %915 = vmatprep.subr.bf16.mxu0 0
  %916 = vmatpush1.bf16.msra.mxu0 0
  %917 = vmatprep.subr.bf16.mxu0 0
  %918 = vmatpush1.bf16.msra.mxu0 0
  %919 = vmatprep.subr.bf16.mxu0 0
  %920 = vmatpush1.bf16.msra.mxu0 0
  %921 = vmatprep.subr.bf16.mxu0 0
  %922 = vmatpush1.bf16.msra.mxu0 0
  %923 = vmatprep.subr.bf16.mxu0 0
  %924 = vmatpush1.bf16.msra.mxu0 0
  %925 = vmatprep.subr.bf16.mxu0 0
  %926 = vmatpush1.bf16.msra.mxu0 0
  %927 = vmatprep.subr.bf16.mxu0 0
  %928 = vmatpush1.bf16.msra.mxu0 %v914
  %929 = vmatprep.subr.bf16.mxu0 0
  %930 = vmatpush1.bf16.msra.mxu0 %v913
  %931 = vmatprep.subr.bf16.mxu0 0
  %932 = vmatpush2.bf16.msra.mxu0 0
  %933 = vmatprep.subr.bf16.mxu0 0
  %934 = vmatpush2.bf16.msra.mxu0 0
  %935 = vmatprep.subr.bf16.mxu0 0
  %936 = vmatpush2.bf16.msra.mxu0 0
  %937 = vmatprep.subr.bf16.mxu0 0
  %938 = vmatpush2.bf16.msra.mxu0 0
  %939 = vmatprep.subr.bf16.mxu0 0
  %940 = vmatpush2.bf16.msra.mxu0 0
  %941 = vmatprep.subr.bf16.mxu0 0
  %942 = vmatpush2.bf16.msra.mxu0 0
  %943 = vmatprep.subr.bf16.mxu0 0
  %944 = vmatpush2.bf16.msra.mxu0 0
  %945 = vmatprep.subr.bf16.mxu0 0
  %946 = vmatpush2.bf16.msra.mxu0 0
  %947 = vmatprep.mubr.bf16.mxu0 0
  %948 = vmatmul.mubr.bf16.gmra.mxu0 %v336
  %v949 = vpop.f32.mrf.mxu0
  %v950 = vadd.f32 0.0, %v949
  %v951 = vpop.f32.mrf.mxu0
  %v952 = vpop.f32.mrf.mxu0
  %v953 = vadd.f32 0.0, %v952
  %v954 = vpop.f32.mrf.mxu0
  %955 = vmatprep.mubr.bf16.mxu0 0
  %956 = vmatmul.mubr.bf16.gmra.mxu0 %v339
  %v957 = vpop.f32.mrf.mxu0
  %v958 = vadd.f32 0.0, %v957
  %v959 = vpop.f32.mrf.mxu0
  %v960 = vpop.f32.mrf.mxu0
  %v961 = vadd.f32 0.0, %v960
  %v962 = vpop.f32.mrf.mxu0
  %963 = vmatprep.mubr.bf16.mxu0 0
  %964 = vmatmul.mubr.bf16.gmra.mxu0 %v342
  %v965 = vpop.f32.mrf.mxu0
  %v966 = vadd.f32 0.0, %v965
  %v967 = vpop.f32.mrf.mxu0
  %v968 = vpop.f32.mrf.mxu0
  %v969 = vadd.f32 0.0, %v968
  %v970 = vpop.f32.mrf.mxu0
  %971 = vmatprep.mubr.bf16.mxu0 0
  %972 = vmatmul.mubr.bf16.gmra.mxu0 %v345
  %v973 = vpop.f32.mrf.mxu0
  %v974 = vadd.f32 0.0, %v973
  %v975 = vpop.f32.mrf.mxu0
  %v976 = vpop.f32.mrf.mxu0
  %v977 = vadd.f32 0.0, %v976
  %v978 = vpop.f32.mrf.mxu0
  %979 = vmatprep.mubr.bf16.mxu0 0
  %980 = vmatmul.mubr.bf16.gmra.mxu0 %v348
  %v981 = vpop.f32.mrf.mxu0
  %v982 = vadd.f32 0.0, %v981
  %v983 = vpop.f32.mrf.mxu0
  %v984 = vpop.f32.mrf.mxu0
  %v985 = vadd.f32 0.0, %v984
  %v986 = vpop.f32.mrf.mxu0
  %987 = vmatprep.mubr.bf16.mxu0 0
  %988 = vmatmul.mubr.bf16.gmra.mxu0 %v351
  %v989 = vpop.f32.mrf.mxu0
  %v990 = vadd.f32 0.0, %v989
  %v991 = vpop.f32.mrf.mxu0
  %v992 = vpop.f32.mrf.mxu0
  %v993 = vadd.f32 0.0, %v992
  %v994 = vpop.f32.mrf.mxu0
  %995 = vmatprep.mubr.bf16.mxu0 0
  %996 = vmatmul.mubr.bf16.gmra.mxu0 %v354
  %v997 = vpop.f32.mrf.mxu0
  %v998 = vadd.f32 0.0, %v997
  %v999 = vpop.f32.mrf.mxu0
  %v1000 = vpop.f32.mrf.mxu0
  %v1001 = vadd.f32 0.0, %v1000
  %v1002 = vpop.f32.mrf.mxu0
  %1003 = vmatprep.mubr.bf16.mxu0 0
  %1004 = vmatmul.mubr.bf16.gmra.mxu0 %v357
  %v1005 = vpop.f32.mrf.mxu0
  %v1006 = vadd.f32 0.0, %v1005
  %v1007 = vpop.f32.mrf.mxu0
  %v1008 = vpop.f32.mrf.mxu0
  %v1009 = vadd.f32 0.0, %v1008
  %v1010 = vpop.f32.mrf.mxu0
  %1011 = vdwg.mxu0
  %v1012 = vadd.f32 %v834, %v950
  %v1013 = vadd.f32 %v835, %v953
  %v1014 = vadd.f32 %v836, %v958
  %v1015 = vadd.f32 %v837, %v961
  %v1016 = vadd.f32 %v838, %v966
  %v1017 = vadd.f32 %v839, %v969
  %v1018 = vadd.f32 %v840, %v974
  %v1019 = vadd.f32 %v841, %v977
  %v1020 = vadd.f32 %v842, %v982
  %v1021 = vadd.f32 %v843, %v985
  %v1022 = vadd.f32 %v844, %v990
  %v1023 = vadd.f32 %v845, %v993
  %v1024 = vadd.f32 %v846, %v998
  %v1025 = vadd.f32 %v847, %v1001
  %v1026 = vadd.f32 %v848, %v1006
  %v1027 = vadd.f32 %v849, %v1009
  %v1028 = vpack.c.bf16 %v1013, %v1012
  %v1029 = vpack.c.bf16 %v1015, %v1014
  %v1030 = vpack.c.bf16 %v1017, %v1016
  %v1031 = vpack.c.bf16 %v1019, %v1018
  %v1032 = vpack.c.bf16 %v1021, %v1020
  %v1033 = vpack.c.bf16 %v1023, %v1022
  %v1034 = vpack.c.bf16 %v1025, %v1024
  %v1035 = vpack.c.bf16 %v1027, %v1026
  %s1036 = scalar_lea.vmem %s7, 64
  %v1037 = vld [vmem:[%s1036] sm:$0xf]
  %v1038 = vld [vmem:[%s1036 + $0x4] sm:$0xf]
  %v1039 = vld [vmem:[%s1036 + $0x8] sm:$0xf]
  %v1040 = vld [vmem:[%s1036 + $0xc] sm:$0xf]
  %v1041 = vld [vmem:[%s1036 + $0x10] sm:$0xf]
  %v1042 = vld [vmem:[%s1036 + $0x14] sm:$0xf]
  %v1043 = vld [vmem:[%s1036 + $0x18] sm:$0xf]
  %v1044 = vld [vmem:[%s1036 + $0x1c] sm:$0xf]
  %v1045 = vld [vmem:[%s1036 + $0x20] sm:$0xf]
  %v1046 = vld [vmem:[%s1036 + $0x24] sm:$0xf]
  %v1047 = vld [vmem:[%s1036 + $0x28] sm:$0xf]
  %v1048 = vld [vmem:[%s1036 + $0x2c] sm:$0xf]
  %v1049 = vld [vmem:[%s1036 + $0x30] sm:$0xf]
  %v1050 = vld [vmem:[%s1036 + $0x34] sm:$0xf]
  %v1051 = vld [vmem:[%s1036 + $0x38] sm:$0xf]
  %v1052 = vld [vmem:[%s1036 + $0x3c] sm:$0xf]
  %v1053 = vlaneseq
  %v1054 = vshrl.u32 %v1053, 7
  %v1055 = vsub.s32 0, %v1054
  %v1056 = vrot.slane %v851, %v1055
  %v1073 = vunpack.c.l.b16 %v1037
  %v1074 = vunpack.c.l.b16 %v1038
  %v1075 = vunpack.c.l.b16 %v1039
  %v1076 = vunpack.c.l.b16 %v1040
  %v1077 = vunpack.c.l.b16 %v1041
  %v1078 = vunpack.c.l.b16 %v1042
  %v1079 = vunpack.c.l.b16 %v1043
  %v1080 = vunpack.c.l.b16 %v1044
  %v1081 = vunpack.c.l.b16 %v1045
  %v1082 = vunpack.c.l.b16 %v1046
  %v1083 = vunpack.c.l.b16 %v1047
  %v1084 = vunpack.c.l.b16 %v1048
  %v1085 = vunpack.c.l.b16 %v1049
  %v1086 = vunpack.c.l.b16 %v1050
  %v1087 = vunpack.c.l.b16 %v1051
  %v1088 = vunpack.c.l.b16 %v1052
  %v1089 = vpack.c.b16 %v1074, %v1073
  %v1090 = vpack.c.b16 %v1076, %v1075
  %v1091 = vpack.c.b16 %v1078, %v1077
  %v1092 = vpack.c.b16 %v1080, %v1079
  %v1093 = vpack.c.b16 %v1082, %v1081
  %v1094 = vpack.c.b16 %v1084, %v1083
  %v1095 = vpack.c.b16 %v1086, %v1085
  %v1096 = vpack.c.b16 %v1088, %v1087
  %1105 = vmatprep.subr.bf16.mxu0 0
  %1106 = vmatpush1.bf16.msra.mxu0 %v1096
  %1107 = vmatprep.subr.bf16.mxu0 0
  %1108 = vmatpush1.bf16.msra.mxu0 %v1095
  %1109 = vmatprep.subr.bf16.mxu0 0
  %1110 = vmatpush1.bf16.msra.mxu0 %v1094
  %1111 = vmatprep.subr.bf16.mxu0 0
  %1112 = vmatpush1.bf16.msra.mxu0 %v1093
  %1113 = vmatprep.subr.bf16.mxu0 0
  %1114 = vmatpush1.bf16.msra.mxu0 %v1092
  %1115 = vmatprep.subr.bf16.mxu0 0
  %1116 = vmatpush1.bf16.msra.mxu0 %v1091
  %1117 = vmatprep.subr.bf16.mxu0 0
  %1118 = vmatpush1.bf16.msra.mxu0 %v1090
  %1119 = vmatprep.subr.bf16.mxu0 0
  %1120 = vmatpush1.bf16.msra.mxu0 %v1089
  %1121 = vmatprep.subr.bf16.mxu0 0
  %1122 = vmatpush2.bf16.msra.mxu0 0
  %1123 = vmatprep.subr.bf16.mxu0 0
  %1124 = vmatpush2.bf16.msra.mxu0 0
  %1125 = vmatprep.subr.bf16.mxu0 0
  %1126 = vmatpush2.bf16.msra.mxu0 0
  %1127 = vmatprep.subr.bf16.mxu0 0
  %1128 = vmatpush2.bf16.msra.mxu0 0
  %1129 = vmatprep.subr.bf16.mxu0 0
  %1130 = vmatpush2.bf16.msra.mxu0 0
  %1131 = vmatprep.subr.bf16.mxu0 0
  %1132 = vmatpush2.bf16.msra.mxu0 0
  %1133 = vmatprep.subr.bf16.mxu0 0
  %1134 = vmatpush2.bf16.msra.mxu0 0
  %1135 = vmatprep.subr.bf16.mxu0 0
  %1136 = vmatpush2.bf16.msra.mxu0 0
  %1137 = vmatprep.mubr.bf16.mxu0 0
  %1138 = vmatmul.mubr.bf16.gmra.mxu0 %v1028
  %v1139 = vpop.f32.mrf.mxu0
  %v1140 = vadd.f32 %v1056, %v1139
  %v1141 = vpop.f32.mrf.mxu0
  %v1142 = vpop.f32.mrf.mxu0
  %v1143 = vadd.f32 %v1056, %v1142
  %v1144 = vpop.f32.mrf.mxu0
  %1145 = vmatprep.mubr.bf16.mxu0 0
  %1146 = vmatmul.mubr.bf16.gmra.mxu0 %v1029
  %v1147 = vpop.f32.mrf.mxu0
  %v1148 = vadd.f32 %v1056, %v1147
  %v1149 = vpop.f32.mrf.mxu0
  %v1150 = vpop.f32.mrf.mxu0
  %v1151 = vadd.f32 %v1056, %v1150
  %v1152 = vpop.f32.mrf.mxu0
  %1153 = vmatprep.mubr.bf16.mxu0 0
  %1154 = vmatmul.mubr.bf16.gmra.mxu0 %v1030
  %v1155 = vpop.f32.mrf.mxu0
  %v1156 = vadd.f32 %v1056, %v1155
  %v1157 = vpop.f32.mrf.mxu0
  %v1158 = vpop.f32.mrf.mxu0
  %v1159 = vadd.f32 %v1056, %v1158
  %v1160 = vpop.f32.mrf.mxu0
  %1161 = vmatprep.mubr.bf16.mxu0 0
  %1162 = vmatmul.mubr.bf16.gmra.mxu0 %v1031
  %v1163 = vpop.f32.mrf.mxu0
  %v1164 = vadd.f32 %v1056, %v1163
  %v1165 = vpop.f32.mrf.mxu0
  %v1166 = vpop.f32.mrf.mxu0
  %v1167 = vadd.f32 %v1056, %v1166
  %v1168 = vpop.f32.mrf.mxu0
  %1169 = vmatprep.mubr.bf16.mxu0 0
  %1170 = vmatmul.mubr.bf16.gmra.mxu0 %v1032
  %v1171 = vpop.f32.mrf.mxu0
  %v1172 = vadd.f32 %v1056, %v1171
  %v1173 = vpop.f32.mrf.mxu0
  %v1174 = vpop.f32.mrf.mxu0
  %v1175 = vadd.f32 %v1056, %v1174
  %v1176 = vpop.f32.mrf.mxu0
  %1177 = vmatprep.mubr.bf16.mxu0 0
  %1178 = vmatmul.mubr.bf16.gmra.mxu0 %v1033
  %v1179 = vpop.f32.mrf.mxu0
  %v1180 = vadd.f32 %v1056, %v1179
  %v1181 = vpop.f32.mrf.mxu0
  %v1182 = vpop.f32.mrf.mxu0
  %v1183 = vadd.f32 %v1056, %v1182
  %v1184 = vpop.f32.mrf.mxu0
  %1185 = vmatprep.mubr.bf16.mxu0 0
  %1186 = vmatmul.mubr.bf16.gmra.mxu0 %v1034
  %v1187 = vpop.f32.mrf.mxu0
  %v1188 = vadd.f32 %v1056, %v1187
  %v1189 = vpop.f32.mrf.mxu0
  %v1190 = vpop.f32.mrf.mxu0
  %v1191 = vadd.f32 %v1056, %v1190
  %v1192 = vpop.f32.mrf.mxu0
  %1193 = vmatprep.mubr.bf16.mxu0 0
  %1194 = vmatmul.mubr.bf16.gmra.mxu0 %v1035
  %v1195 = vpop.f32.mrf.mxu0
  %v1196 = vadd.f32 %v1056, %v1195
  %v1197 = vpop.f32.mrf.mxu0
  %v1198 = vpop.f32.mrf.mxu0
  %v1199 = vadd.f32 %v1056, %v1198
  %v1200 = vpop.f32.mrf.mxu0
  %1201 = vdwg.mxu0
  %v1202 = vmax.f32 %v1140, 0.0
  %v1203 = vmax.f32 %v1143, 0.0
  %v1204 = vmax.f32 %v1148, 0.0
  %v1205 = vmax.f32 %v1151, 0.0
  %v1206 = vmax.f32 %v1156, 0.0
  %v1207 = vmax.f32 %v1159, 0.0
  %v1208 = vmax.f32 %v1164, 0.0
  %v1209 = vmax.f32 %v1167, 0.0
  %v1210 = vmax.f32 %v1172, 0.0
  %v1211 = vmax.f32 %v1175, 0.0
  %v1212 = vmax.f32 %v1180, 0.0
  %v1213 = vmax.f32 %v1183, 0.0
  %v1214 = vmax.f32 %v1188, 0.0
  %v1215 = vmax.f32 %v1191, 0.0
  %v1216 = vmax.f32 %v1196, 0.0
  %v1217 = vmax.f32 %v1199, 0.0
  %v1218 = vpack.c.bf16 %v1203, %v1202
  %v1219 = vpack.c.bf16 %v1205, %v1204
  %v1220 = vpack.c.bf16 %v1207, %v1206
  %v1221 = vpack.c.bf16 %v1209, %v1208
  %v1222 = vpack.c.bf16 %v1211, %v1210
  %v1223 = vpack.c.bf16 %v1213, %v1212
  %v1224 = vpack.c.bf16 %v1215, %v1214
  %v1225 = vpack.c.bf16 %v1217, %v1216
  %s1226 = scalar_lea.vmem %s8, 64
  %v1227 = vld [vmem:[%s1226] sm:$0xf]
  %v1228 = vld [vmem:[%s1226 + $0x4] sm:$0xf]
  %v1229 = vld [vmem:[%s1226 + $0x8] sm:$0xf]
  %v1230 = vld [vmem:[%s1226 + $0xc] sm:$0xf]
  %v1231 = vld [vmem:[%s1226 + $0x10] sm:$0xf]
  %v1232 = vld [vmem:[%s1226 + $0x14] sm:$0xf]
  %v1233 = vld [vmem:[%s1226 + $0x18] sm:$0xf]
  %v1234 = vld [vmem:[%s1226 + $0x1c] sm:$0xf]
  %v1235 = vld [vmem:[%s1226 + $0x20] sm:$0xf]
  %v1236 = vld [vmem:[%s1226 + $0x24] sm:$0xf]
  %v1237 = vld [vmem:[%s1226 + $0x28] sm:$0xf]
  %v1238 = vld [vmem:[%s1226 + $0x2c] sm:$0xf]
  %v1239 = vld [vmem:[%s1226 + $0x30] sm:$0xf]
  %v1240 = vld [vmem:[%s1226 + $0x34] sm:$0xf]
  %v1241 = vld [vmem:[%s1226 + $0x38] sm:$0xf]
  %v1242 = vld [vmem:[%s1226 + $0x3c] sm:$0xf]
  %v1243 = vlaneseq
  %v1244 = vshrl.u32 %v1243, 7
  %v1245 = vsub.s32 1, %v1244
  %v1246 = vrot.slane %v851, %v1245
  %v1263 = vunpack.c.l.b16 %v1227
  %v1264 = vunpack.c.l.b16 %v1228
  %v1265 = vunpack.c.l.b16 %v1229
  %v1266 = vunpack.c.l.b16 %v1230
  %v1267 = vunpack.c.l.b16 %v1231
  %v1268 = vunpack.c.l.b16 %v1232
  %v1269 = vunpack.c.l.b16 %v1233
  %v1270 = vunpack.c.l.b16 %v1234
  %v1271 = vunpack.c.l.b16 %v1235
  %v1272 = vunpack.c.l.b16 %v1236
  %v1273 = vunpack.c.l.b16 %v1237
  %v1274 = vunpack.c.l.b16 %v1238
  %v1275 = vunpack.c.l.b16 %v1239
  %v1276 = vunpack.c.l.b16 %v1240
  %v1277 = vunpack.c.l.b16 %v1241
  %v1278 = vunpack.c.l.b16 %v1242
  %v1279 = vpack.c.b16 %v1264, %v1263
  %v1280 = vpack.c.b16 %v1266, %v1265
  %v1281 = vpack.c.b16 %v1268, %v1267
  %v1282 = vpack.c.b16 %v1270, %v1269
  %v1283 = vpack.c.b16 %v1272, %v1271
  %v1284 = vpack.c.b16 %v1274, %v1273
  %v1285 = vpack.c.b16 %v1276, %v1275
  %v1286 = vpack.c.b16 %v1278, %v1277
  %1295 = vmatprep.subr.bf16.mxu0 0
  %1296 = vmatpush1.bf16.msra.mxu0 %v1286
  %1297 = vmatprep.subr.bf16.mxu0 0
  %1298 = vmatpush1.bf16.msra.mxu0 %v1285
  %1299 = vmatprep.subr.bf16.mxu0 0
  %1300 = vmatpush1.bf16.msra.mxu0 %v1284
  %1301 = vmatprep.subr.bf16.mxu0 0
  %1302 = vmatpush1.bf16.msra.mxu0 %v1283
  %1303 = vmatprep.subr.bf16.mxu0 0
  %1304 = vmatpush1.bf16.msra.mxu0 %v1282
  %1305 = vmatprep.subr.bf16.mxu0 0
  %1306 = vmatpush1.bf16.msra.mxu0 %v1281
  %1307 = vmatprep.subr.bf16.mxu0 0
  %1308 = vmatpush1.bf16.msra.mxu0 %v1280
  %1309 = vmatprep.subr.bf16.mxu0 0
  %1310 = vmatpush1.bf16.msra.mxu0 %v1279
  %1311 = vmatprep.subr.bf16.mxu0 0
  %1312 = vmatpush2.bf16.msra.mxu0 0
  %1313 = vmatprep.subr.bf16.mxu0 0
  %1314 = vmatpush2.bf16.msra.mxu0 0
  %1315 = vmatprep.subr.bf16.mxu0 0
  %1316 = vmatpush2.bf16.msra.mxu0 0
  %1317 = vmatprep.subr.bf16.mxu0 0
  %1318 = vmatpush2.bf16.msra.mxu0 0
  %1319 = vmatprep.subr.bf16.mxu0 0
  %1320 = vmatpush2.bf16.msra.mxu0 0
  %1321 = vmatprep.subr.bf16.mxu0 0
  %1322 = vmatpush2.bf16.msra.mxu0 0
  %1323 = vmatprep.subr.bf16.mxu0 0
  %1324 = vmatpush2.bf16.msra.mxu0 0
  %1325 = vmatprep.subr.bf16.mxu0 0
  %1326 = vmatpush2.bf16.msra.mxu0 0
  %1327 = vmatprep.mubr.bf16.mxu0 0
  %1328 = vmatmul.mubr.bf16.gmra.mxu0 %v1218
  %v1329 = vpop.f32.mrf.mxu0
  %v1330 = vadd.f32 %v1246, %v1329
  %v1331 = vpop.f32.mrf.mxu0
  %v1332 = vpop.f32.mrf.mxu0
  %v1333 = vadd.f32 %v1246, %v1332
  %v1334 = vpop.f32.mrf.mxu0
  %1335 = vmatprep.mubr.bf16.mxu0 0
  %1336 = vmatmul.mubr.bf16.gmra.mxu0 %v1219
  %v1337 = vpop.f32.mrf.mxu0
  %v1338 = vadd.f32 %v1246, %v1337
  %v1339 = vpop.f32.mrf.mxu0
  %v1340 = vpop.f32.mrf.mxu0
  %v1341 = vadd.f32 %v1246, %v1340
  %v1342 = vpop.f32.mrf.mxu0
  %1343 = vmatprep.mubr.bf16.mxu0 0
  %1344 = vmatmul.mubr.bf16.gmra.mxu0 %v1220
  %v1345 = vpop.f32.mrf.mxu0
  %v1346 = vadd.f32 %v1246, %v1345
  %v1347 = vpop.f32.mrf.mxu0
  %v1348 = vpop.f32.mrf.mxu0
  %v1349 = vadd.f32 %v1246, %v1348
  %v1350 = vpop.f32.mrf.mxu0
  %1351 = vmatprep.mubr.bf16.mxu0 0
  %1352 = vmatmul.mubr.bf16.gmra.mxu0 %v1221
  %v1353 = vpop.f32.mrf.mxu0
  %v1354 = vadd.f32 %v1246, %v1353
  %v1355 = vpop.f32.mrf.mxu0
  %v1356 = vpop.f32.mrf.mxu0
  %v1357 = vadd.f32 %v1246, %v1356
  %v1358 = vpop.f32.mrf.mxu0
  %1359 = vmatprep.mubr.bf16.mxu0 0
  %1360 = vmatmul.mubr.bf16.gmra.mxu0 %v1222
  %v1361 = vpop.f32.mrf.mxu0
  %v1362 = vadd.f32 %v1246, %v1361
  %v1363 = vpop.f32.mrf.mxu0
  %v1364 = vpop.f32.mrf.mxu0
  %v1365 = vadd.f32 %v1246, %v1364
  %v1366 = vpop.f32.mrf.mxu0
  %1367 = vmatprep.mubr.bf16.mxu0 0
  %1368 = vmatmul.mubr.bf16.gmra.mxu0 %v1223
  %v1369 = vpop.f32.mrf.mxu0
  %v1370 = vadd.f32 %v1246, %v1369
  %v1371 = vpop.f32.mrf.mxu0
  %v1372 = vpop.f32.mrf.mxu0
  %v1373 = vadd.f32 %v1246, %v1372
  %v1374 = vpop.f32.mrf.mxu0
  %1375 = vmatprep.mubr.bf16.mxu0 0
  %1376 = vmatmul.mubr.bf16.gmra.mxu0 %v1224
  %v1377 = vpop.f32.mrf.mxu0
  %v1378 = vadd.f32 %v1246, %v1377
  %v1379 = vpop.f32.mrf.mxu0
  %v1380 = vpop.f32.mrf.mxu0
  %v1381 = vadd.f32 %v1246, %v1380
  %v1382 = vpop.f32.mrf.mxu0
  %1383 = vmatprep.mubr.bf16.mxu0 0
  %1384 = vmatmul.mubr.bf16.gmra.mxu0 %v1225
  %v1385 = vpop.f32.mrf.mxu0
  %v1386 = vadd.f32 %v1246, %v1385
  %v1387 = vpop.f32.mrf.mxu0
  %v1388 = vpop.f32.mrf.mxu0
  %v1389 = vadd.f32 %v1246, %v1388
  %v1390 = vpop.f32.mrf.mxu0
  %1391 = vdwg.mxu0
  %v1392 = vmax.f32 %v1330, 0.0
  %v1393 = vmax.f32 %v1333, 0.0
  %v1394 = vmax.f32 %v1338, 0.0
  %v1395 = vmax.f32 %v1341, 0.0
  %v1396 = vmax.f32 %v1346, 0.0
  %v1397 = vmax.f32 %v1349, 0.0
  %v1398 = vmax.f32 %v1354, 0.0
  %v1399 = vmax.f32 %v1357, 0.0
  %v1400 = vmax.f32 %v1362, 0.0
  %v1401 = vmax.f32 %v1365, 0.0
  %v1402 = vmax.f32 %v1370, 0.0
  %v1403 = vmax.f32 %v1373, 0.0
  %v1404 = vmax.f32 %v1378, 0.0
  %v1405 = vmax.f32 %v1381, 0.0
  %v1406 = vmax.f32 %v1386, 0.0
  %v1407 = vmax.f32 %v1389, 0.0
  %v1408 = vpack.c.bf16 %v1393, %v1392
  %v1409 = vpack.c.bf16 %v1395, %v1394
  %v1410 = vpack.c.bf16 %v1397, %v1396
  %v1411 = vpack.c.bf16 %v1399, %v1398
  %v1412 = vpack.c.bf16 %v1401, %v1400
  %v1413 = vpack.c.bf16 %v1403, %v1402
  %v1414 = vpack.c.bf16 %v1405, %v1404
  %v1415 = vpack.c.bf16 %v1407, %v1406
  %v1416 = vld [vmem:[%s10] sm:$0xf]
  %v1417 = vld [vmem:[%s10 + $0x4] sm:$0xf]
  %v1418 = vld [vmem:[%s10 + $0x8] sm:$0xf]
  %v1419 = vld [vmem:[%s10 + $0xc] sm:$0xf]
  %v1420 = vld [vmem:[%s10 + $0x10] sm:$0xf]
  %v1421 = vld [vmem:[%s10 + $0x14] sm:$0xf]
  %v1422 = vld [vmem:[%s10 + $0x18] sm:$0xf]
  %v1423 = vld [vmem:[%s10 + $0x1c] sm:$0xf]
  %v1424 = vld [vmem:[%s10 + $0x20] sm:$0xf]
  %v1425 = vld [vmem:[%s10 + $0x24] sm:$0xf]
  %v1426 = vld [vmem:[%s10 + $0x28] sm:$0xf]
  %v1427 = vld [vmem:[%s10 + $0x2c] sm:$0xf]
  %v1428 = vld [vmem:[%s10 + $0x30] sm:$0xf]
  %v1429 = vld [vmem:[%s10 + $0x34] sm:$0xf]
  %v1430 = vld [vmem:[%s10 + $0x38] sm:$0xf]
  %v1431 = vld [vmem:[%s10 + $0x3c] sm:$0xf]
  %v1448 = vunpack.c.l.b16 %v1416
  %v1449 = vunpack.c.l.b16 %v1417
  %v1450 = vunpack.c.l.b16 %v1418
  %v1451 = vunpack.c.l.b16 %v1419
  %v1452 = vunpack.c.l.b16 %v1420
  %v1453 = vunpack.c.l.b16 %v1421
  %v1454 = vunpack.c.l.b16 %v1422
  %v1455 = vunpack.c.l.b16 %v1423
  %v1456 = vunpack.c.l.b16 %v1424
  %v1457 = vunpack.c.l.b16 %v1425
  %v1458 = vunpack.c.l.b16 %v1426
  %v1459 = vunpack.c.l.b16 %v1427
  %v1460 = vunpack.c.l.b16 %v1428
  %v1461 = vunpack.c.l.b16 %v1429
  %v1462 = vunpack.c.l.b16 %v1430
  %v1463 = vunpack.c.l.b16 %v1431
  %v1464 = vpack.c.b16 %v1449, %v1448
  %v1465 = vpack.c.b16 %v1451, %v1450
  %v1466 = vpack.c.b16 %v1453, %v1452
  %v1467 = vpack.c.b16 %v1455, %v1454
  %v1468 = vpack.c.b16 %v1457, %v1456
  %v1469 = vpack.c.b16 %v1459, %v1458
  %v1470 = vpack.c.b16 %v1461, %v1460
  %v1471 = vpack.c.b16 %v1463, %v1462
  %1480 = vmatprep.subr.bf16.mxu0 0
  %1481 = vmatpush1.bf16.msra.mxu0 %v1471
  %1482 = vmatprep.subr.bf16.mxu0 0
  %1483 = vmatpush1.bf16.msra.mxu0 %v1470
  %1484 = vmatprep.subr.bf16.mxu0 0
  %1485 = vmatpush1.bf16.msra.mxu0 %v1469
  %1486 = vmatprep.subr.bf16.mxu0 0
  %1487 = vmatpush1.bf16.msra.mxu0 %v1468
  %1488 = vmatprep.subr.bf16.mxu0 0
  %1489 = vmatpush1.bf16.msra.mxu0 %v1467
  %1490 = vmatprep.subr.bf16.mxu0 0
  %1491 = vmatpush1.bf16.msra.mxu0 %v1466
  %1492 = vmatprep.subr.bf16.mxu0 0
  %1493 = vmatpush1.bf16.msra.mxu0 %v1465
  %1494 = vmatprep.subr.bf16.mxu0 0
  %1495 = vmatpush1.bf16.msra.mxu0 %v1464
  %1496 = vmatprep.subr.bf16.mxu0 0
  %1497 = vmatpush2.bf16.msra.mxu0 0
  %1498 = vmatprep.subr.bf16.mxu0 0
  %1499 = vmatpush2.bf16.msra.mxu0 0
  %1500 = vmatprep.subr.bf16.mxu0 0
  %1501 = vmatpush2.bf16.msra.mxu0 0
  %1502 = vmatprep.subr.bf16.mxu0 0
  %1503 = vmatpush2.bf16.msra.mxu0 0
  %1504 = vmatprep.subr.bf16.mxu0 0
  %1505 = vmatpush2.bf16.msra.mxu0 0
  %1506 = vmatprep.subr.bf16.mxu0 0
  %1507 = vmatpush2.bf16.msra.mxu0 0
  %1508 = vmatprep.subr.bf16.mxu0 0
  %1509 = vmatpush2.bf16.msra.mxu0 0
  %1510 = vmatprep.subr.bf16.mxu0 0
  %1511 = vmatpush2.bf16.msra.mxu0 0
  %1512 = vmatprep.mubr.bf16.mxu0 0
  %1513 = vmatmul.mubr.bf16.gmra.mxu0 %v1408
  %v1514 = vpop.f32.mrf.mxu0
  %v1515 = vadd.f32 0.0, %v1514
  %v1516 = vpop.f32.mrf.mxu0
  %v1517 = vpop.f32.mrf.mxu0
  %v1518 = vadd.f32 0.0, %v1517
  %v1519 = vpop.f32.mrf.mxu0
  %1520 = vmatprep.mubr.bf16.mxu0 0
  %1521 = vmatmul.mubr.bf16.gmra.mxu0 %v1409
  %v1522 = vpop.f32.mrf.mxu0
  %v1523 = vadd.f32 0.0, %v1522
  %v1524 = vpop.f32.mrf.mxu0
  %v1525 = vpop.f32.mrf.mxu0
  %v1526 = vadd.f32 0.0, %v1525
  %v1527 = vpop.f32.mrf.mxu0
  %1528 = vmatprep.mubr.bf16.mxu0 0
  %1529 = vmatmul.mubr.bf16.gmra.mxu0 %v1410
  %v1530 = vpop.f32.mrf.mxu0
  %v1531 = vadd.f32 0.0, %v1530
  %v1532 = vpop.f32.mrf.mxu0
  %v1533 = vpop.f32.mrf.mxu0
  %v1534 = vadd.f32 0.0, %v1533
  %v1535 = vpop.f32.mrf.mxu0
  %1536 = vmatprep.mubr.bf16.mxu0 0
  %1537 = vmatmul.mubr.bf16.gmra.mxu0 %v1411
  %v1538 = vpop.f32.mrf.mxu0
  %v1539 = vadd.f32 0.0, %v1538
  %v1540 = vpop.f32.mrf.mxu0
  %v1541 = vpop.f32.mrf.mxu0
  %v1542 = vadd.f32 0.0, %v1541
  %v1543 = vpop.f32.mrf.mxu0
  %1544 = vmatprep.mubr.bf16.mxu0 0
  %1545 = vmatmul.mubr.bf16.gmra.mxu0 %v1412
  %v1546 = vpop.f32.mrf.mxu0
  %v1547 = vadd.f32 0.0, %v1546
  %v1548 = vpop.f32.mrf.mxu0
  %v1549 = vpop.f32.mrf.mxu0
  %v1550 = vadd.f32 0.0, %v1549
  %v1551 = vpop.f32.mrf.mxu0
  %1552 = vmatprep.mubr.bf16.mxu0 0
  %1553 = vmatmul.mubr.bf16.gmra.mxu0 %v1413
  %v1554 = vpop.f32.mrf.mxu0
  %v1555 = vadd.f32 0.0, %v1554
  %v1556 = vpop.f32.mrf.mxu0
  %v1557 = vpop.f32.mrf.mxu0
  %v1558 = vadd.f32 0.0, %v1557
  %v1559 = vpop.f32.mrf.mxu0
  %1560 = vmatprep.mubr.bf16.mxu0 0
  %1561 = vmatmul.mubr.bf16.gmra.mxu0 %v1414
  %v1562 = vpop.f32.mrf.mxu0
  %v1563 = vadd.f32 0.0, %v1562
  %v1564 = vpop.f32.mrf.mxu0
  %v1565 = vpop.f32.mrf.mxu0
  %v1566 = vadd.f32 0.0, %v1565
  %v1567 = vpop.f32.mrf.mxu0
  %1568 = vmatprep.mubr.bf16.mxu0 0
  %1569 = vmatmul.mubr.bf16.gmra.mxu0 %v1415
  %v1570 = vpop.f32.mrf.mxu0
  %v1571 = vadd.f32 0.0, %v1570
  %v1572 = vpop.f32.mrf.mxu0
  %v1573 = vpop.f32.mrf.mxu0
  %v1574 = vadd.f32 0.0, %v1573
  %v1575 = vpop.f32.mrf.mxu0
  %1576 = vdwg.mxu0
  %v1577 = vmax.f32 %v1515, 0.0
  %v1578 = vmax.f32 %v1518, 0.0
  %v1579 = vmax.f32 %v1523, 0.0
  %v1580 = vmax.f32 %v1526, 0.0
  %v1581 = vmax.f32 %v1531, 0.0
  %v1582 = vmax.f32 %v1534, 0.0
  %v1583 = vmax.f32 %v1539, 0.0
  %v1584 = vmax.f32 %v1542, 0.0
  %v1585 = vmax.f32 %v1547, 0.0
  %v1586 = vmax.f32 %v1550, 0.0
  %v1587 = vmax.f32 %v1555, 0.0
  %v1588 = vmax.f32 %v1558, 0.0
  %v1589 = vmax.f32 %v1563, 0.0
  %v1590 = vmax.f32 %v1566, 0.0
  %v1591 = vmax.f32 %v1571, 0.0
  %v1592 = vmax.f32 %v1574, 0.0
  %v1593 = vpack.c.bf16 %v1578, %v1577
  %v1594 = vpack.c.bf16 %v1580, %v1579
  %v1595 = vpack.c.bf16 %v1582, %v1581
  %v1596 = vpack.c.bf16 %v1584, %v1583
  %v1597 = vpack.c.bf16 %v1586, %v1585
  %v1598 = vpack.c.bf16 %v1588, %v1587
  %v1599 = vpack.c.bf16 %v1590, %v1589
  %v1600 = vpack.c.bf16 %v1592, %v1591
  %s1601 = scalar_lea.vmem %s10, 64
  %v1602 = vld [vmem:[%s1601] sm:$0xf]
  %v1603 = vld [vmem:[%s1601 + $0x4] sm:$0xf]
  %v1604 = vld [vmem:[%s1601 + $0x8] sm:$0xf]
  %v1605 = vld [vmem:[%s1601 + $0xc] sm:$0xf]
  %v1606 = vld [vmem:[%s1601 + $0x10] sm:$0xf]
  %v1607 = vld [vmem:[%s1601 + $0x14] sm:$0xf]
  %v1608 = vld [vmem:[%s1601 + $0x18] sm:$0xf]
  %v1609 = vld [vmem:[%s1601 + $0x1c] sm:$0xf]
  %v1610 = vld [vmem:[%s1601 + $0x20] sm:$0xf]
  %v1611 = vld [vmem:[%s1601 + $0x24] sm:$0xf]
  %v1612 = vld [vmem:[%s1601 + $0x28] sm:$0xf]
  %v1613 = vld [vmem:[%s1601 + $0x2c] sm:$0xf]
  %v1614 = vld [vmem:[%s1601 + $0x30] sm:$0xf]
  %v1615 = vld [vmem:[%s1601 + $0x34] sm:$0xf]
  %v1616 = vld [vmem:[%s1601 + $0x38] sm:$0xf]
  %v1617 = vld [vmem:[%s1601 + $0x3c] sm:$0xf]
  %v1634 = vunpack.c.l.b16 %v1602
  %v1635 = vunpack.c.l.b16 %v1603
  %v1636 = vunpack.c.l.b16 %v1604
  %v1637 = vunpack.c.l.b16 %v1605
  %v1638 = vunpack.c.l.b16 %v1606
  %v1639 = vunpack.c.l.b16 %v1607
  %v1640 = vunpack.c.l.b16 %v1608
  %v1641 = vunpack.c.l.b16 %v1609
  %v1642 = vunpack.c.l.b16 %v1610
  %v1643 = vunpack.c.l.b16 %v1611
  %v1644 = vunpack.c.l.b16 %v1612
  %v1645 = vunpack.c.l.b16 %v1613
  %v1646 = vunpack.c.l.b16 %v1614
  %v1647 = vunpack.c.l.b16 %v1615
  %v1648 = vunpack.c.l.b16 %v1616
  %v1649 = vunpack.c.l.b16 %v1617
  %v1650 = vpack.c.b16 %v1635, %v1634
  %v1651 = vpack.c.b16 %v1637, %v1636
  %v1652 = vpack.c.b16 %v1639, %v1638
  %v1653 = vpack.c.b16 %v1641, %v1640
  %v1654 = vpack.c.b16 %v1643, %v1642
  %v1655 = vpack.c.b16 %v1645, %v1644
  %v1656 = vpack.c.b16 %v1647, %v1646
  %v1657 = vpack.c.b16 %v1649, %v1648
  %1666 = vmatprep.subr.bf16.mxu0 0
  %1667 = vmatpush1.bf16.msra.mxu0 %v1657
  %1668 = vmatprep.subr.bf16.mxu0 0
  %1669 = vmatpush1.bf16.msra.mxu0 %v1656
  %1670 = vmatprep.subr.bf16.mxu0 0
  %1671 = vmatpush1.bf16.msra.mxu0 %v1655
  %1672 = vmatprep.subr.bf16.mxu0 0
  %1673 = vmatpush1.bf16.msra.mxu0 %v1654
  %1674 = vmatprep.subr.bf16.mxu0 0
  %1675 = vmatpush1.bf16.msra.mxu0 %v1653
  %1676 = vmatprep.subr.bf16.mxu0 0
  %1677 = vmatpush1.bf16.msra.mxu0 %v1652
  %1678 = vmatprep.subr.bf16.mxu0 0
  %1679 = vmatpush1.bf16.msra.mxu0 %v1651
  %1680 = vmatprep.subr.bf16.mxu0 0
  %1681 = vmatpush1.bf16.msra.mxu0 %v1650
  %1682 = vmatprep.subr.bf16.mxu0 0
  %1683 = vmatpush2.bf16.msra.mxu0 0
  %1684 = vmatprep.subr.bf16.mxu0 0
  %1685 = vmatpush2.bf16.msra.mxu0 0
  %1686 = vmatprep.subr.bf16.mxu0 0
  %1687 = vmatpush2.bf16.msra.mxu0 0
  %1688 = vmatprep.subr.bf16.mxu0 0
  %1689 = vmatpush2.bf16.msra.mxu0 0
  %1690 = vmatprep.subr.bf16.mxu0 0
  %1691 = vmatpush2.bf16.msra.mxu0 0
  %1692 = vmatprep.subr.bf16.mxu0 0
  %1693 = vmatpush2.bf16.msra.mxu0 0
  %1694 = vmatprep.subr.bf16.mxu0 0
  %1695 = vmatpush2.bf16.msra.mxu0 0
  %1696 = vmatprep.subr.bf16.mxu0 0
  %1697 = vmatpush2.bf16.msra.mxu0 0
  %1698 = vmatprep.mubr.bf16.mxu0 0
  %1699 = vmatmul.mubr.bf16.gmra.mxu0 %v1593
  %v1700 = vpop.f32.mrf.mxu0
  %v1701 = vadd.f32 0.0, %v1700
  %v1702 = vpop.f32.mrf.mxu0
  %v1703 = vpop.f32.mrf.mxu0
  %v1704 = vadd.f32 0.0, %v1703
  %v1705 = vpop.f32.mrf.mxu0
  %1706 = vmatprep.mubr.bf16.mxu0 0
  %1707 = vmatmul.mubr.bf16.gmra.mxu0 %v1594
  %v1708 = vpop.f32.mrf.mxu0
  %v1709 = vadd.f32 0.0, %v1708
  %v1710 = vpop.f32.mrf.mxu0
  %v1711 = vpop.f32.mrf.mxu0
  %v1712 = vadd.f32 0.0, %v1711
  %v1713 = vpop.f32.mrf.mxu0
  %1714 = vmatprep.mubr.bf16.mxu0 0
  %1715 = vmatmul.mubr.bf16.gmra.mxu0 %v1595
  %v1716 = vpop.f32.mrf.mxu0
  %v1717 = vadd.f32 0.0, %v1716
  %v1718 = vpop.f32.mrf.mxu0
  %v1719 = vpop.f32.mrf.mxu0
  %v1720 = vadd.f32 0.0, %v1719
  %v1721 = vpop.f32.mrf.mxu0
  %1722 = vmatprep.mubr.bf16.mxu0 0
  %1723 = vmatmul.mubr.bf16.gmra.mxu0 %v1596
  %v1724 = vpop.f32.mrf.mxu0
  %v1725 = vadd.f32 0.0, %v1724
  %v1726 = vpop.f32.mrf.mxu0
  %v1727 = vpop.f32.mrf.mxu0
  %v1728 = vadd.f32 0.0, %v1727
  %v1729 = vpop.f32.mrf.mxu0
  %1730 = vmatprep.mubr.bf16.mxu0 0
  %1731 = vmatmul.mubr.bf16.gmra.mxu0 %v1597
  %v1732 = vpop.f32.mrf.mxu0
  %v1733 = vadd.f32 0.0, %v1732
  %v1734 = vpop.f32.mrf.mxu0
  %v1735 = vpop.f32.mrf.mxu0
  %v1736 = vadd.f32 0.0, %v1735
  %v1737 = vpop.f32.mrf.mxu0
  %1738 = vmatprep.mubr.bf16.mxu0 0
  %1739 = vmatmul.mubr.bf16.gmra.mxu0 %v1598
  %v1740 = vpop.f32.mrf.mxu0
  %v1741 = vadd.f32 0.0, %v1740
  %v1742 = vpop.f32.mrf.mxu0
  %v1743 = vpop.f32.mrf.mxu0
  %v1744 = vadd.f32 0.0, %v1743
  %v1745 = vpop.f32.mrf.mxu0
  %1746 = vmatprep.mubr.bf16.mxu0 0
  %1747 = vmatmul.mubr.bf16.gmra.mxu0 %v1599
  %v1748 = vpop.f32.mrf.mxu0
  %v1749 = vadd.f32 0.0, %v1748
  %v1750 = vpop.f32.mrf.mxu0
  %v1751 = vpop.f32.mrf.mxu0
  %v1752 = vadd.f32 0.0, %v1751
  %v1753 = vpop.f32.mrf.mxu0
  %1754 = vmatprep.mubr.bf16.mxu0 0
  %1755 = vmatmul.mubr.bf16.gmra.mxu0 %v1600
  %v1756 = vpop.f32.mrf.mxu0
  %v1757 = vadd.f32 0.0, %v1756
  %v1758 = vpop.f32.mrf.mxu0
  %v1759 = vpop.f32.mrf.mxu0
  %v1760 = vadd.f32 0.0, %v1759
  %v1761 = vpop.f32.mrf.mxu0
  %1762 = vdwg.mxu0
  %v1763 = vmax.f32 %v1701, 0.0
  %v1764 = vmax.f32 %v1704, 0.0
  %v1765 = vmax.f32 %v1709, 0.0
  %v1766 = vmax.f32 %v1712, 0.0
  %v1767 = vmax.f32 %v1717, 0.0
  %v1768 = vmax.f32 %v1720, 0.0
  %v1769 = vmax.f32 %v1725, 0.0
  %v1770 = vmax.f32 %v1728, 0.0
  %v1771 = vmax.f32 %v1733, 0.0
  %v1772 = vmax.f32 %v1736, 0.0
  %v1773 = vmax.f32 %v1741, 0.0
  %v1774 = vmax.f32 %v1744, 0.0
  %v1775 = vmax.f32 %v1749, 0.0
  %v1776 = vmax.f32 %v1752, 0.0
  %v1777 = vmax.f32 %v1757, 0.0
  %v1778 = vmax.f32 %v1760, 0.0
  %v1779 = vmax.f32 %v1763, %v1764
  %v1780 = vrot.slane %v1779, 4
  %v1781 = vmax.f32 %v1779, %v1780
  %v1782 = vrot.slane %v1781, 2
  %v1783 = vmax.f32 %v1781, %v1782
  %v1784 = vrot.slane %v1783, 1
  %v1785 = vmax.f32 %v1783, %v1784
  %v1786 = vsub.f32 %v1763, %v1785
  %v1787 = vsub.f32 %v1764, %v1785
  %v1788 = vsub.f32 %v1765, %v1785
  %v1789 = vsub.f32 %v1766, %v1785
  %v1790 = vsub.f32 %v1767, %v1785
  %v1791 = vsub.f32 %v1768, %v1785
  %v1792 = vsub.f32 %v1769, %v1785
  %v1793 = vsub.f32 %v1770, %v1785
  %v1794 = vsub.f32 %v1771, %v1785
  %v1795 = vsub.f32 %v1772, %v1785
  %v1796 = vsub.f32 %v1773, %v1785
  %v1797 = vsub.f32 %v1774, %v1785
  %v1798 = vsub.f32 %v1775, %v1785
  %v1799 = vsub.f32 %v1776, %v1785
  %v1800 = vsub.f32 %v1777, %v1785
  %v1801 = vsub.f32 %v1778, %v1785
  %v1802 = vmul.f32 %v1786, 1.442695
  %v1803 = vpow.pop %v1802
  %v1804 = vmul.f32 %v1787, 1.442695
  %v1805 = vpow.pop %v1804
  %v1806 = vmul.f32 %v1788, 1.442695
  %v1807 = vpow.pop %v1806
  %v1808 = vmul.f32 %v1789, 1.442695
  %v1809 = vpow.pop %v1808
  %v1810 = vmul.f32 %v1790, 1.442695
  %v1811 = vpow.pop %v1810
  %v1812 = vmul.f32 %v1791, 1.442695
  %v1813 = vpow.pop %v1812
  %v1814 = vmul.f32 %v1792, 1.442695
  %v1815 = vpow.pop %v1814
  %v1816 = vmul.f32 %v1793, 1.442695
  %v1817 = vpow.pop %v1816
  %v1818 = vmul.f32 %v1794, 1.442695
  %v1819 = vpow.pop %v1818
  %v1820 = vmul.f32 %v1795, 1.442695
  %v1821 = vpow.pop %v1820
  %v1822 = vmul.f32 %v1796, 1.442695
  %v1823 = vpow.pop %v1822
  %v1824 = vmul.f32 %v1797, 1.442695
  %v1825 = vpow.pop %v1824
  %v1826 = vmul.f32 %v1798, 1.442695
  %v1827 = vpow.pop %v1826
  %v1828 = vmul.f32 %v1799, 1.442695
  %v1829 = vpow.pop %v1828
  %v1830 = vmul.f32 %v1800, 1.442695
  %v1831 = vpow.pop %v1830
  %v1832 = vmul.f32 %v1801, 1.442695
  %v1833 = vpow.pop %v1832
  %v1834 = vld [vmem:[%s4] sm:$0xff]
  %v1835 = vld [vmem:[%s4 + $0x8] sm:$0xff]
  %v1836 = vld [vmem:[%s4 + $0x10] sm:$0xff]
  %v1837 = vld [vmem:[%s4 + $0x18] sm:$0xff]
  %v1838 = vld [vmem:[%s4 + $0x20] sm:$0xff]
  %v1839 = vld [vmem:[%s4 + $0x28] sm:$0xff]
  %v1840 = vld [vmem:[%s4 + $0x30] sm:$0xff]
  %v1841 = vld [vmem:[%s4 + $0x38] sm:$0xff]
  %v1842 = vld [vmem:[%s4 + $0x40] sm:$0xff]
  %v1843 = vld [vmem:[%s4 + $0x48] sm:$0xff]
  %v1844 = vld [vmem:[%s4 + $0x50] sm:$0xff]
  %v1845 = vld [vmem:[%s4 + $0x58] sm:$0xff]
  %v1846 = vld [vmem:[%s4 + $0x60] sm:$0xff]
  %v1847 = vld [vmem:[%s4 + $0x68] sm:$0xff]
  %v1848 = vld [vmem:[%s4 + $0x70] sm:$0xff]
  %v1849 = vld [vmem:[%s4 + $0x78] sm:$0xff]
  %1850 = vmatprep.subr.mxu0 0.0
  %1851 = vmatpush1.msra.mxu0 %v1833
  %1852 = vmatprep.subr.mxu0 0.0
  %1853 = vmatpush1.msra.mxu0 %v1831
  %1854 = vmatprep.subr.mxu0 0.0
  %1855 = vmatpush1.msra.mxu0 %v1829
  %1856 = vmatprep.subr.mxu0 0.0
  %1857 = vmatpush1.msra.mxu0 %v1827
  %1858 = vmatprep.subr.mxu0 0.0
  %1859 = vmatpush1.msra.mxu0 %v1825
  %1860 = vmatprep.subr.mxu0 0.0
  %1861 = vmatpush1.msra.mxu0 %v1823
  %1862 = vmatprep.subr.mxu0 0.0
  %1863 = vmatpush1.msra.mxu0 %v1821
  %1864 = vmatprep.subr.mxu0 0.0
  %1865 = vmatpush1.msra.mxu0 %v1819
  %1866 = vmatprep.subr.mxu0 0.0
  %1867 = vmatpush1.msra.mxu0 %v1817
  %1868 = vmatprep.subr.mxu0 0.0
  %1869 = vmatpush1.msra.mxu0 %v1815
  %1870 = vmatprep.subr.mxu0 0.0
  %1871 = vmatpush1.msra.mxu0 %v1813
  %1872 = vmatprep.subr.mxu0 0.0
  %1873 = vmatpush1.msra.mxu0 %v1811
  %1874 = vmatprep.subr.mxu0 0.0
  %1875 = vmatpush1.msra.mxu0 %v1809
  %1876 = vmatprep.subr.mxu0 0.0
  %1877 = vmatpush1.msra.mxu0 %v1807
  %1878 = vmatprep.subr.mxu0 0.0
  %1879 = vmatpush1.msra.mxu0 %v1805
  %1880 = vmatprep.subr.mxu0 0.0
  %1881 = vmatpush1.msra.mxu0 %v1803
  %1882 = vmatprep.subr.mxu0 0.0
  %1883 = vmatpush2.msra.mxu0 0.0
  %1884 = vmatprep.subr.mxu0 0.0
  %1885 = vmatpush2.msra.mxu0 0.0
  %1886 = vmatprep.subr.mxu0 0.0
  %1887 = vmatpush2.msra.mxu0 0.0
  %1888 = vmatprep.subr.mxu0 0.0
  %1889 = vmatpush2.msra.mxu0 0.0
  %1890 = vmatprep.subr.mxu0 0.0
  %1891 = vmatpush2.msra.mxu0 0.0
  %1892 = vmatprep.subr.mxu0 0.0
  %1893 = vmatpush2.msra.mxu0 0.0
  %1894 = vmatprep.subr.mxu0 0.0
  %1895 = vmatpush2.msra.mxu0 0.0
  %1896 = vmatprep.subr.mxu0 0.0
  %1897 = vmatpush2.msra.mxu0 0.0
  %1898 = vmatprep.subr.mxu0 0.0
  %1899 = vmatpush2.msra.mxu0 0.0
  %1900 = vmatprep.subr.mxu0 0.0
  %1901 = vmatpush2.msra.mxu0 0.0
  %1902 = vmatprep.subr.mxu0 0.0
  %1903 = vmatpush2.msra.mxu0 0.0
  %1904 = vmatprep.subr.mxu0 0.0
  %1905 = vmatpush2.msra.mxu0 0.0
  %1906 = vmatprep.subr.mxu0 0.0
  %1907 = vmatpush2.msra.mxu0 0.0
  %1908 = vmatprep.subr.mxu0 0.0
  %1909 = vmatpush2.msra.mxu0 0.0
  %1910 = vmatprep.subr.mxu0 0.0
  %1911 = vmatpush2.msra.mxu0 0.0
  %1912 = vmatprep.subr.mxu0 0.0
  %1913 = vmatpush2.msra.mxu0 0.0
  %1914 = vmatprep.mubr.f32.mxu0 0.0
  %1915 = vmatmul.mubr.f32.gmra.mxu0 %v1834
  %v1916 = vpop.f32.mrf.mxu0
  %v1917 = vadd.f32 0.0, %v1916
  %v1918 = vpop.f32.mrf.mxu0
  %1919 = vmatprep.mubr.f32.mxu0 0.0
  %1920 = vmatmul.mubr.f32.gmra.mxu0 %v1835
  %v1921 = vpop.f32.mrf.mxu0
  %v1922 = vadd.f32 0.0, %v1921
  %v1923 = vpop.f32.mrf.mxu0
  %1924 = vmatprep.mubr.f32.mxu0 0.0
  %1925 = vmatmul.mubr.f32.gmra.mxu0 %v1836
  %v1926 = vpop.f32.mrf.mxu0
  %v1927 = vadd.f32 0.0, %v1926
  %v1928 = vpop.f32.mrf.mxu0
  %1929 = vmatprep.mubr.f32.mxu0 0.0
  %1930 = vmatmul.mubr.f32.gmra.mxu0 %v1837
  %v1931 = vpop.f32.mrf.mxu0
  %v1932 = vadd.f32 0.0, %v1931
  %v1933 = vpop.f32.mrf.mxu0
  %1934 = vmatprep.mubr.f32.mxu0 0.0
  %1935 = vmatmul.mubr.f32.gmra.mxu0 %v1838
  %v1936 = vpop.f32.mrf.mxu0
  %v1937 = vadd.f32 0.0, %v1936
  %v1938 = vpop.f32.mrf.mxu0
  %1939 = vmatprep.mubr.f32.mxu0 0.0
  %1940 = vmatmul.mubr.f32.gmra.mxu0 %v1839
  %v1941 = vpop.f32.mrf.mxu0
  %v1942 = vadd.f32 0.0, %v1941
  %v1943 = vpop.f32.mrf.mxu0
  %1944 = vmatprep.mubr.f32.mxu0 0.0
  %1945 = vmatmul.mubr.f32.gmra.mxu0 %v1840
  %v1946 = vpop.f32.mrf.mxu0
  %v1947 = vadd.f32 0.0, %v1946
  %v1948 = vpop.f32.mrf.mxu0
  %1949 = vmatprep.mubr.f32.mxu0 0.0
  %1950 = vmatmul.mubr.f32.gmra.mxu0 %v1841
  %v1951 = vpop.f32.mrf.mxu0
  %v1952 = vadd.f32 0.0, %v1951
  %v1953 = vpop.f32.mrf.mxu0
  %1954 = vmatprep.mubr.f32.mxu0 0.0
  %1955 = vmatmul.mubr.f32.gmra.mxu0 %v1842
  %v1956 = vpop.f32.mrf.mxu0
  %v1957 = vadd.f32 0.0, %v1956
  %v1958 = vpop.f32.mrf.mxu0
  %1959 = vmatprep.mubr.f32.mxu0 0.0
  %1960 = vmatmul.mubr.f32.gmra.mxu0 %v1843
  %v1961 = vpop.f32.mrf.mxu0
  %v1962 = vadd.f32 0.0, %v1961
  %v1963 = vpop.f32.mrf.mxu0
  %1964 = vmatprep.mubr.f32.mxu0 0.0
  %1965 = vmatmul.mubr.f32.gmra.mxu0 %v1844
  %v1966 = vpop.f32.mrf.mxu0
  %v1967 = vadd.f32 0.0, %v1966
  %v1968 = vpop.f32.mrf.mxu0
  %1969 = vmatprep.mubr.f32.mxu0 0.0
  %1970 = vmatmul.mubr.f32.gmra.mxu0 %v1845
  %v1971 = vpop.f32.mrf.mxu0
  %v1972 = vadd.f32 0.0, %v1971
  %v1973 = vpop.f32.mrf.mxu0
  %1974 = vmatprep.mubr.f32.mxu0 0.0
  %1975 = vmatmul.mubr.f32.gmra.mxu0 %v1846
  %v1976 = vpop.f32.mrf.mxu0
  %v1977 = vadd.f32 0.0, %v1976
  %v1978 = vpop.f32.mrf.mxu0
  %1979 = vmatprep.mubr.f32.mxu0 0.0
  %1980 = vmatmul.mubr.f32.gmra.mxu0 %v1847
  %v1981 = vpop.f32.mrf.mxu0
  %v1982 = vadd.f32 0.0, %v1981
  %v1983 = vpop.f32.mrf.mxu0
  %1984 = vmatprep.mubr.f32.mxu0 0.0
  %1985 = vmatmul.mubr.f32.gmra.mxu0 %v1848
  %v1986 = vpop.f32.mrf.mxu0
  %v1987 = vadd.f32 0.0, %v1986
  %v1988 = vpop.f32.mrf.mxu0
  %1989 = vmatprep.mubr.f32.mxu0 0.0
  %1990 = vmatmul.mubr.f32.gmra.mxu0 %v1849
  %v1991 = vpop.f32.mrf.mxu0
  %v1992 = vadd.f32 0.0, %v1991
  %v1993 = vpop.f32.mrf.mxu0
  %1994 = vdwg.mxu0
  %v1995 = vmax.f32 %v1917, 1e-30
  %v1996 = vmax.f32 %v1922, 1e-30
  %v1997 = vmax.f32 %v1927, 1e-30
  %v1998 = vmax.f32 %v1932, 1e-30
  %v1999 = vmax.f32 %v1937, 1e-30
  %v2000 = vmax.f32 %v1942, 1e-30
  %v2001 = vmax.f32 %v1947, 1e-30
  %v2002 = vmax.f32 %v1952, 1e-30
  %v2003 = vmax.f32 %v1957, 1e-30
  %v2004 = vmax.f32 %v1962, 1e-30
  %v2005 = vmax.f32 %v1967, 1e-30
  %v2006 = vmax.f32 %v1972, 1e-30
  %v2007 = vmax.f32 %v1977, 1e-30
  %v2008 = vmax.f32 %v1982, 1e-30
  %v2009 = vmax.f32 %v1987, 1e-30
  %v2010 = vmax.f32 %v1992, 1e-30
  %v2011 = vrcp.pop %v1995
  %v2012 = vrcp.pop %v1996
  %v2013 = vrcp.pop %v1997
  %v2014 = vrcp.pop %v1998
  %v2015 = vrcp.pop %v1999
  %v2016 = vrcp.pop %v2000
  %v2017 = vrcp.pop %v2001
  %v2018 = vrcp.pop %v2002
  %v2019 = vrcp.pop %v2003
  %v2020 = vrcp.pop %v2004
  %v2021 = vrcp.pop %v2005
  %v2022 = vrcp.pop %v2006
  %v2023 = vrcp.pop %v2007
  %v2024 = vrcp.pop %v2008
  %v2025 = vrcp.pop %v2009
  %v2026 = vrcp.pop %v2010
  %v2027 = vmul.f32 %v1803, %v2011
  %v2028 = vmul.f32 %v1805, %v2012
  %v2029 = vmul.f32 %v1807, %v2013
  %v2030 = vmul.f32 %v1809, %v2014
  %v2031 = vmul.f32 %v1811, %v2015
  %v2032 = vmul.f32 %v1813, %v2016
  %v2033 = vmul.f32 %v1815, %v2017
  %v2034 = vmul.f32 %v1817, %v2018
  %v2035 = vmul.f32 %v1819, %v2019
  %v2036 = vmul.f32 %v1821, %v2020
  %v2037 = vmul.f32 %v1823, %v2021
  %v2038 = vmul.f32 %v1825, %v2022
  %v2039 = vmul.f32 %v1827, %v2023
  %v2040 = vmul.f32 %v1829, %v2024
  %v2041 = vmul.f32 %v1831, %v2025
  %v2042 = vmul.f32 %v1833, %v2026
  %2043 = vst [vmem:[%s11] sm:$0xff] %v2027
  %2044 = vst [vmem:[%s11 + $0x8] sm:$0xff] %v2028
  %2045 = vst [vmem:[%s11 + $0x10] sm:$0xff] %v2029
  %2046 = vst [vmem:[%s11 + $0x18] sm:$0xff] %v2030
  %2047 = vst [vmem:[%s11 + $0x20] sm:$0xff] %v2031
  %2048 = vst [vmem:[%s11 + $0x28] sm:$0xff] %v2032
  %2049 = vst [vmem:[%s11 + $0x30] sm:$0xff] %v2033
  %2050 = vst [vmem:[%s11 + $0x38] sm:$0xff] %v2034
  %2051 = vst [vmem:[%s11 + $0x40] sm:$0xff] %v2035
  %2052 = vst [vmem:[%s11 + $0x48] sm:$0xff] %v2036
  %2053 = vst [vmem:[%s11 + $0x50] sm:$0xff] %v2037
  %2054 = vst [vmem:[%s11 + $0x58] sm:$0xff] %v2038
  %2055 = vst [vmem:[%s11 + $0x60] sm:$0xff] %v2039
  %2056 = vst [vmem:[%s11 + $0x68] sm:$0xff] %v2040
  %2057 = vst [vmem:[%s11 + $0x70] sm:$0xff] %v2041
  %2058 = vst [vmem:[%s11 + $0x78] sm:$0xff] %v2042
  // Predicated region
  $region46: #{position_actor_forward.1} parent=0 // pred_check
    _
  $region47: #{position_actor_forward.1} parent=0 // pred_check_branch
    %2060 = sbr.rel (0) target = $region49
  $region48: #{position_actor_forward.1} parent=0 // pred_region
    _
  $region49: #{position_actor_forward.1} parent=0 // pred_fallthru
    _
  // Predicated region
  $region50: #{position_actor_forward.1} parent=0 // pred_check
    _
  $region51: #{position_actor_forward.1} parent=0 // pred_check_branch
    %2062 = sbr.rel (0) target = $region53
  $region52: #{position_actor_forward.1} parent=0 // pred_region
    _
  $region53: #{position_actor_forward.1} parent=0 // pred_fallthru
    _

</llo_original>
